<compile_context>
chip_gen: v5e
topology: v5e:2x2
jax: 0.10.0
libtpu: 0.0.40
codegen_flags: <defaults>
</compile_context>

<pallas_src>
import functools

import jax
import jax.numpy as jnp
from jax.experimental import pallas as pl
from jax.experimental.pallas import tpu as pltpu


def _round_up(x, m):
    return (x + m - 1) // m * m


def _device_kind():
    try:
        return jax.devices()[0].device_kind.lower()
    except Exception:
        return ""


def _default_compute_dtype():
    # bf16 streaming (f32 accumulate) on v6e / v7x per the perf review; f32
    # elsewhere (keeps the tight 1e-3 check on older gens).
    kind = _device_kind()
    if any(tag in kind for tag in ("v6", "v7", "7x")):
        return jnp.bfloat16
    return jnp.float32


def _pick_batch_tile(batch, rows_per_image, target_rows=512):
    """Largest divisor of `batch` with <= target output rows per grid step,
    while keeping >= 2 grid steps whenever batch >= 2 (megacore / 2nd TC)."""
    best = 1
    for d in range(1, batch + 1):
        if batch % d == 0 and d * rows_per_image <= target_rows:
            best = d
    if batch > 1 and batch // best < 2:
        for d in range(best, 0, -1):
            if batch % d == 0 and batch // d >= 2:
                return d
    return best


def _conv_relu_kernel(xp_ref, w_ref, b_ref, o_ref, *, KH, KW, S, OH, OWp, Hq):
    """Fused Conv2d(valid) + bias + ReLU for a tile of TB images.

    xp_ref: (TB, S*S*Hq, Wq, Cin)  space-to-batch ("phased") input block
    w_ref : (KH*KW, Cin, OC)       per-tap weight matrices (VMEM resident)
    b_ref : (1, OC)                bias (VMEM resident, f32)
    o_ref : (TB*OH*OWp, OC)        output rows, (b, oh, ow)-major, f32
    """
    TB = xp_ref.shape[0]
    Cin = xp_ref.shape[-1]
    OC = o_ref.shape[-1]
    rows = TB * OH * OWp

    acc = jnp.zeros((rows, OC), jnp.float32)
    for kh in range(KH):            # static unroll over conv taps
        rh, qh = kh % S, kh // S
        for kw in range(KW):
            rw, qw = kw % S, kw // S
            p0 = (rh * S + rw) * Hq + qh
            # Static, unit-stride slice of the phased input == the (kh, kw)
            # tap of the implicit im2col patch for every output position.
            patch = xp_ref[:, p0:p0 + OH, qw:qw + OWp, :]   # (TB, OH, OWp, Cin)
            patch = patch.reshape(rows, Cin)                # free: OWp % 8 == 0
            acc = acc + jnp.dot(patch, w_ref[kh * KW + kw],
                                preferred_element_type=jnp.float32)
    o_ref[...] = jnp.maximum(acc + b_ref[...], 0.0)          # bias + ReLU fused


def conv2d_relu_pallas(act, valid_hw, w_oihw, bias, stride, *, compute_dtype,
                       target_rows=512):
    """One Conv2d(valid) + ReLU layer.

    act      : (B, Hs, Ws, Cin) stored NHWC activation.  Ws may exceed the
               valid width (alignment padding from the previous layer); valid
               outputs never read those columns.
    valid_hw : (Hv, Wv) valid spatial extents inside `act`.
    Returns  : (out_act, (OH, OW)) with out_act (B, OH, OWp, OC), OWp = ceil8(OW).
    """
    B, Hs, Ws, Cin_s = act.shape
    OC, Cin, KH, KW = w_oihw.shape
    assert Cin == Cin_s, (Cin, Cin_s)
    S = int(stride)
    Hv, Wv = valid_hw
    OH = (Hv - KH) // S + 1
    OW = (Wv - KW) // S + 1
    OWp = _round_up(OW, 8)          # sublane alignment -> free in-kernel reshape

    # ---- wrapper glue: ONE |act|-sized space-to-batch copy (replaces the old
    #      KH*KW/S^2-amplified HBM im2col).  For S == 1 this is just a pad. ----
    W_need = KW + (OWp - 1) * S                 # rightmost column the kernel reads
    Hp = _round_up(Hs, S)
    Wp = _round_up(max(Ws, W_need), S)
    a = jnp.pad(act, ((0, 0), (0, Hp - Hs), (0, Wp - Ws), (0, 0)))
    Hq, Wq = Hp // S, Wp // S
    # (B, Hq, S, Wq, S, C) -> (B, S, S, Hq, Wq, C) -> (B, S*S*Hq, Wq, C)
    xp = a.reshape(B, Hq, S, Wq, S, Cin).transpose(0, 2, 4, 1, 3, 5)
    xp = xp.reshape(B, S * S * Hq, Wq, Cin).astype(compute_dtype)

    # weights (OC, Cin, KH, KW) -> (KH*KW, Cin, OC); bias -> (1, OC) f32.
    wm = jnp.transpose(w_oihw, (2, 3, 1, 0)).reshape(KH * KW, Cin, OC)
    wm = wm.astype(compute_dtype)
    b2 = bias.reshape(1, OC).astype(jnp.float32)

    TB = _pick_batch_tile(B, OH * OWp, target_rows)
    rows_step = TB * OH * OWp

    kernel = functools.partial(_conv_relu_kernel, KH=KH, KW=KW, S=S,
                               OH=OH, OWp=OWp, Hq=Hq)
    out = pl.pallas_call(
        kernel,
        out_shape=jax.ShapeDtypeStruct((B * OH * OWp, OC), jnp.float32),
        grid_spec=pltpu.PrefetchScalarGridSpec(
            num_scalar_prefetch=0,
            grid=(B // TB,),
            in_specs=[
                # streamed: TB whole phased images per grid step (double-buffered)
                pl.BlockSpec((TB, S * S * Hq, Wq, Cin), lambda i: (i, 0, 0, 0)),
                # resident across the grid: weights + bias (constant index_map)
                pl.BlockSpec((KH * KW, Cin, OC), lambda i: (0, 0, 0)),
                pl.BlockSpec((1, OC), lambda i: (0, 0)),
            ],
            out_specs=pl.BlockSpec((rows_step, OC), lambda i: (i, 0)),
        ),
        compiler_params=pltpu.CompilerParams(
            dimension_semantics=("parallel",)),   # megacore / multi-TC split
    )(xp, wm, b2)

    return out.reshape(B, OH, OWp, OC), (OH, OW)


@functools.partial(jax.jit, static_argnames=("convs", "compute_dtype"))
def cnn_forward(x_nchw, params, convs, compute_dtype=jnp.float32):
    """CNN.forward: Sequential(Conv2d, ReLU, ...). NCHW in, NCHW out."""
    x = jnp.transpose(x_nchw, (0, 2, 3, 1))       # NCHW -> NHWC (channels on lanes)
    valid = (x.shape[1], x.shape[2])
    for (w, b), (_oc, _ks, stride) in zip(params, convs):
        x, valid = conv2d_relu_pallas(x, valid, w, b, stride,
                                      compute_dtype=compute_dtype)
    OH, OW = valid
    x = x[:, :, :OW, :]                            # drop alignment padding once
    return jnp.transpose(x, (0, 3, 1, 2))          # NHWC -> NCHW like PyTorch


def init_params(key, input_channel, convs):
    """Deterministic Conv2d params in the PyTorch (OC, Cin, KH, KW) convention."""
    params = []
    cin = input_channel
    for i, (oc, ks, _stride) in enumerate(convs):
        kw_key, kb_key = jax.random.split(jax.random.fold_in(key, i))
        w = jax.random.normal(kw_key, (oc, cin, ks, ks), jnp.float32) * 0.05
        b = jax.random.normal(kb_key, (oc,), jnp.float32) * 0.05
        params.append((w, b))
        cin = oc
    return tuple(params)


def reference_forward(x_nchw, params, convs):
    """Pure-JAX (XLA conv) reference mirroring the PyTorch forward."""
    x = x_nchw
    for (w, b), (_oc, _ks, stride) in zip(params, convs):
        x = jax.lax.conv_general_dilated(
            x, w, window_strides=(stride, stride), padding="VALID",
            dimension_numbers=("NCHW", "OIHW", "NCHW"),
            precision=jax.lax.Precision.HIGHEST)
        x = jnp.maximum(x + b.reshape(1, -1, 1, 1), 0.0)
    return x


if __name__ == "__main__":
    # Small deterministic instance: batch=2, 4 input channels, 16x16 spatial,
    # convs = ((32, 4, 2), (64, 3, 1)) -> (2, 32, 7, 7) -> (2, 64, 5, 5).
    B, C, H, W = 2, 4, 16, 16
    convs = ((32, 4, 2), (64, 3, 1))   # (output_channel, kernel_size, stride)

    key = jax.random.PRNGKey(0)
    kx, kp = jax.random.split(key)
    x = jax.random.normal(kx, (B, C, H, W), jnp.float32)   # NCHW like PyTorch
    params = init_params(kp, C, convs)

    compute_dtype = _default_compute_dtype()
    out = cnn_forward(x, params, convs=convs, compute_dtype=compute_dtype)
    out = jax.block_until_ready(out)

    ref = reference_forward(x, params, convs)
    # f32 streaming: same tolerance that passed before (default MXU precision).
    # bf16 streaming (v6e/v7x): f32 accumulation keeps per-layer error ~1e-3;
    # 2e-2 abs/rel is a >5-sigma bound for this 2-layer stack.
    tol = 1e-3 if compute_dtype == jnp.float32 else 2e-2
    assert out.shape == (B, convs[-1][0], 5, 5), out.shape
    assert jnp.allclose(out, ref, atol=tol, rtol=tol), "mismatch vs reference"

    print("KERNEL_OK")
</pallas_src>

<mosaic_0001>
module attributes {stable_mosaic.version = 11 : i64} {
  func.func @_conv_relu_kernel(%arg0: i32, %arg1: memref<1x32x9x4xf32, #tpu.memory_space<vmem>>, %arg2: memref<16x4x32xf32, #tpu.memory_space<vmem>>, %arg3: memref<1x32xf32, #tpu.memory_space<vmem>>, %arg4: memref<56x32xf32, #tpu.memory_space<vmem>>) attributes {dimension_semantics = [#tpu.dimension_semantics<parallel>], iteration_bounds = array<i64: 2>, scalar_prefetch = 0 : i64, scratch_operands = 0 : i64, tpu.core_type = #tpu.core_type<tc>, window_params = [{transform_indices = @transform_0, window_bounds = array<i64: 1, 32, 9, 4>}, {pipeline_mode = #tpu.pipeline_mode<synchronous>, transform_indices = @transform_1, window_bounds = array<i64: 16, 4, 32>}, {pipeline_mode = #tpu.pipeline_mode<synchronous>, transform_indices = @transform_2, window_bounds = array<i64: 1, 32>}, {transform_indices = @transform_3, window_bounds = array<i64: 56, 32>}]} {
    %cst = arith.constant 0.000000e+00 : f32
    %0 = vector.broadcast %cst : f32 to vector<56x32xf32>
    %c0 = arith.constant 0 : index
    %c0_0 = arith.constant 0 : index
    %c0_1 = arith.constant 0 : index
    %c0_2 = arith.constant 0 : index
    %1 = vector.load %arg1[%c0, %c0_0, %c0_1, %c0_2] : memref<1x32x9x4xf32, #tpu.memory_space<vmem>>, vector<1x7x8x4xf32>
    %2 = vector.shape_cast %1 : vector<1x7x8x4xf32> to vector<56x4xf32>
    %c0_3 = arith.constant 0 : index
    %c0_4 = arith.constant 0 : index
    %c0_5 = arith.constant 0 : index
    %3 = vector.load %arg2[%c0_3, %c0_4, %c0_5] : memref<16x4x32xf32, #tpu.memory_space<vmem>>, vector<1x4x32xf32>
    %4 = vector.shape_cast %3 : vector<1x4x32xf32> to vector<4x32xf32>
    %cst_6 = arith.constant dense<0.000000e+00> : vector<56x32xf32>
    %5 = tpu.matmul %2, %4, %cst_6 {dimension_numbers = #tpu.dot_dimension_numbers<[1], [0], [0], [1], [0, 0, 1, 1], [], []>} : vector<56x4xf32>, vector<4x32xf32>, vector<56x32xf32> -> vector<56x32xf32>
    %6 = arith.addf %0, %5 : vector<56x32xf32>
    %c0_7 = arith.constant 0 : index
    %c8 = arith.constant 8 : index
    %c0_8 = arith.constant 0 : index
    %c0_9 = arith.constant 0 : index
    %7 = vector.load %arg1[%c0_7, %c8, %c0_8, %c0_9] : memref<1x32x9x4xf32, #tpu.memory_space<vmem>>, vector<1x7x8x4xf32>
    %8 = vector.shape_cast %7 : vector<1x7x8x4xf32> to vector<56x4xf32>
    %c1 = arith.constant 1 : index
    %c0_10 = arith.constant 0 : index
    %c0_11 = arith.constant 0 : index
    %9 = vector.load %arg2[%c1, %c0_10, %c0_11] : memref<16x4x32xf32, #tpu.memory_space<vmem>>, vector<1x4x32xf32>
    %10 = vector.shape_cast %9 : vector<1x4x32xf32> to vector<4x32xf32>
    %cst_12 = arith.constant dense<0.000000e+00> : vector<56x32xf32>
    %11 = tpu.matmul %8, %10, %cst_12 {dimension_numbers = #tpu.dot_dimension_numbers<[1], [0], [0], [1], [0, 0, 1, 1], [], []>} : vector<56x4xf32>, vector<4x32xf32>, vector<56x32xf32> -> vector<56x32xf32>
    %12 = arith.addf %6, %11 : vector<56x32xf32>
    %c0_13 = arith.constant 0 : index
    %c0_14 = arith.constant 0 : index
    %c1_15 = arith.constant 1 : index
    %c0_16 = arith.constant 0 : index
    %13 = vector.load %arg1[%c0_13, %c0_14, %c1_15, %c0_16] : memref<1x32x9x4xf32, #tpu.memory_space<vmem>>, vector<1x7x8x4xf32>
    %14 = vector.shape_cast %13 : vector<1x7x8x4xf32> to vector<56x4xf32>
    %c2 = arith.constant 2 : index
    %c0_17 = arith.constant 0 : index
    %c0_18 = arith.constant 0 : index
    %15 = vector.load %arg2[%c2, %c0_17, %c0_18] : memref<16x4x32xf32, #tpu.memory_space<vmem>>, vector<1x4x32xf32>
    %16 = vector.shape_cast %15 : vector<1x4x32xf32> to vector<4x32xf32>
    %cst_19 = arith.constant dense<0.000000e+00> : vector<56x32xf32>
    %17 = tpu.matmul %14, %16, %cst_19 {dimension_numbers = #tpu.dot_dimension_numbers<[1], [0], [0], [1], [0, 0, 1, 1], [], []>} : vector<56x4xf32>, vector<4x32xf32>, vector<56x32xf32> -> vector<56x32xf32>
    %18 = arith.addf %12, %17 : vector<56x32xf32>
    %c0_20 = arith.constant 0 : index
    %c8_21 = arith.constant 8 : index
    %c1_22 = arith.constant 1 : index
    %c0_23 = arith.constant 0 : index
    %19 = vector.load %arg1[%c0_20, %c8_21, %c1_22, %c0_23] : memref<1x32x9x4xf32, #tpu.memory_space<vmem>>, vector<1x7x8x4xf32>
    %20 = vector.shape_cast %19 : vector<1x7x8x4xf32> to vector<56x4xf32>
    %c3 = arith.constant 3 : index
    %c0_24 = arith.constant 0 : index
    %c0_25 = arith.constant 0 : index
    %21 = vector.load %arg2[%c3, %c0_24, %c0_25] : memref<16x4x32xf32, #tpu.memory_space<vmem>>, vector<1x4x32xf32>
    %22 = vector.shape_cast %21 : vector<1x4x32xf32> to vector<4x32xf32>
    %cst_26 = arith.constant dense<0.000000e+00> : vector<56x32xf32>
    %23 = tpu.matmul %20, %22, %cst_26 {dimension_numbers = #tpu.dot_dimension_numbers<[1], [0], [0], [1], [0, 0, 1, 1], [], []>} : vector<56x4xf32>, vector<4x32xf32>, vector<56x32xf32> -> vector<56x32xf32>
    %24 = arith.addf %18, %23 : vector<56x32xf32>
    %c0_27 = arith.constant 0 : index
    %c16 = arith.constant 16 : index
    %c0_28 = arith.constant 0 : index
    %c0_29 = arith.constant 0 : index
    %25 = vector.load %arg1[%c0_27, %c16, %c0_28, %c0_29] : memref<1x32x9x4xf32, #tpu.memory_space<vmem>>, vector<1x7x8x4xf32>
    %26 = vector.shape_cast %25 : vector<1x7x8x4xf32> to vector<56x4xf32>
    %c4 = arith.constant 4 : index
    %c0_30 = arith.constant 0 : index
    %c0_31 = arith.constant 0 : index
    %27 = vector.load %arg2[%c4, %c0_30, %c0_31] : memref<16x4x32xf32, #tpu.memory_space<vmem>>, vector<1x4x32xf32>
    %28 = vector.shape_cast %27 : vector<1x4x32xf32> to vector<4x32xf32>
    %cst_32 = arith.constant dense<0.000000e+00> : vector<56x32xf32>
    %29 = tpu.matmul %26, %28, %cst_32 {dimension_numbers = #tpu.dot_dimension_numbers<[1], [0], [0], [1], [0, 0, 1, 1], [], []>} : vector<56x4xf32>, vector<4x32xf32>, vector<56x32xf32> -> vector<56x32xf32>
    %30 = arith.addf %24, %29 : vector<56x32xf32>
    %c0_33 = arith.constant 0 : index
    %c24 = arith.constant 24 : index
    %c0_34 = arith.constant 0 : index
    %c0_35 = arith.constant 0 : index
    %31 = vector.load %arg1[%c0_33, %c24, %c0_34, %c0_35] : memref<1x32x9x4xf32, #tpu.memory_space<vmem>>, vector<1x7x8x4xf32>
    %32 = vector.shape_cast %31 : vector<1x7x8x4xf32> to vector<56x4xf32>
    %c5 = arith.constant 5 : index
    %c0_36 = arith.constant 0 : index
    %c0_37 = arith.constant 0 : index
    %33 = vector.load %arg2[%c5, %c0_36, %c0_37] : memref<16x4x32xf32, #tpu.memory_space<vmem>>, vector<1x4x32xf32>
    %34 = vector.shape_cast %33 : vector<1x4x32xf32> to vector<4x32xf32>
    %cst_38 = arith.constant dense<0.000000e+00> : vector<56x32xf32>
    %35 = tpu.matmul %32, %34, %cst_38 {dimension_numbers = #tpu.dot_dimension_numbers<[1], [0], [0], [1], [0, 0, 1, 1], [], []>} : vector<56x4xf32>, vector<4x32xf32>, vector<56x32xf32> -> vector<56x32xf32>
    %36 = arith.addf %30, %35 : vector<56x32xf32>
    %c0_39 = arith.constant 0 : index
    %c16_40 = arith.constant 16 : index
    %c1_41 = arith.constant 1 : index
    %c0_42 = arith.constant 0 : index
    %37 = vector.load %arg1[%c0_39, %c16_40, %c1_41, %c0_42] : memref<1x32x9x4xf32, #tpu.memory_space<vmem>>, vector<1x7x8x4xf32>
    %38 = vector.shape_cast %37 : vector<1x7x8x4xf32> to vector<56x4xf32>
    %c6 = arith.constant 6 : index
    %c0_43 = arith.constant 0 : index
    %c0_44 = arith.constant 0 : index
    %39 = vector.load %arg2[%c6, %c0_43, %c0_44] : memref<16x4x32xf32, #tpu.memory_space<vmem>>, vector<1x4x32xf32>
    %40 = vector.shape_cast %39 : vector<1x4x32xf32> to vector<4x32xf32>
    %cst_45 = arith.constant dense<0.000000e+00> : vector<56x32xf32>
    %41 = tpu.matmul %38, %40, %cst_45 {dimension_numbers = #tpu.dot_dimension_numbers<[1], [0], [0], [1], [0, 0, 1, 1], [], []>} : vector<56x4xf32>, vector<4x32xf32>, vector<56x32xf32> -> vector<56x32xf32>
    %42 = arith.addf %36, %41 : vector<56x32xf32>
    %c0_46 = arith.constant 0 : index
    %c24_47 = arith.constant 24 : index
    %c1_48 = arith.constant 1 : index
    %c0_49 = arith.constant 0 : index
    %43 = vector.load %arg1[%c0_46, %c24_47, %c1_48, %c0_49] : memref<1x32x9x4xf32, #tpu.memory_space<vmem>>, vector<1x7x8x4xf32>
    %44 = vector.shape_cast %43 : vector<1x7x8x4xf32> to vector<56x4xf32>
    %c7 = arith.constant 7 : index
    %c0_50 = arith.constant 0 : index
    %c0_51 = arith.constant 0 : index
    %45 = vector.load %arg2[%c7, %c0_50, %c0_51] : memref<16x4x32xf32, #tpu.memory_space<vmem>>, vector<1x4x32xf32>
    %46 = vector.shape_cast %45 : vector<1x4x32xf32> to vector<4x32xf32>
    %cst_52 = arith.constant dense<0.000000e+00> : vector<56x32xf32>
    %47 = tpu.matmul %44, %46, %cst_52 {dimension_numbers = #tpu.dot_dimension_numbers<[1], [0], [0], [1], [0, 0, 1, 1], [], []>} : vector<56x4xf32>, vector<4x32xf32>, vector<56x32xf32> -> vector<56x32xf32>
    %48 = arith.addf %42, %47 : vector<56x32xf32>
    %c0_53 = arith.constant 0 : index
    %c1_54 = arith.constant 1 : index
    %c0_55 = arith.constant 0 : index
    %c0_56 = arith.constant 0 : index
    %49 = vector.load %arg1[%c0_53, %c1_54, %c0_55, %c0_56] : memref<1x32x9x4xf32, #tpu.memory_space<vmem>>, vector<1x7x8x4xf32>
    %50 = vector.shape_cast %49 : vector<1x7x8x4xf32> to vector<56x4xf32>
    %c8_57 = arith.constant 8 : index
    %c0_58 = arith.constant 0 : index
    %c0_59 = arith.constant 0 : index
    %51 = vector.load %arg2[%c8_57, %c0_58, %c0_59] : memref<16x4x32xf32, #tpu.memory_space<vmem>>, vector<1x4x32xf32>
    %52 = vector.shape_cast %51 : vector<1x4x32xf32> to vector<4x32xf32>
    %cst_60 = arith.constant dense<0.000000e+00> : vector<56x32xf32>
    %53 = tpu.matmul %50, %52, %cst_60 {dimension_numbers = #tpu.dot_dimension_numbers<[1], [0], [0], [1], [0, 0, 1, 1], [], []>} : vector<56x4xf32>, vector<4x32xf32>, vector<56x32xf32> -> vector<56x32xf32>
    %54 = arith.addf %48, %53 : vector<56x32xf32>
    %c0_61 = arith.constant 0 : index
    %c9 = arith.constant 9 : index
    %c0_62 = arith.constant 0 : index
    %c0_63 = arith.constant 0 : index
    %55 = vector.load %arg1[%c0_61, %c9, %c0_62, %c0_63] : memref<1x32x9x4xf32, #tpu.memory_space<vmem>>, vector<1x7x8x4xf32>
    %56 = vector.shape_cast %55 : vector<1x7x8x4xf32> to vector<56x4xf32>
    %c9_64 = arith.constant 9 : index
    %c0_65 = arith.constant 0 : index
    %c0_66 = arith.constant 0 : index
    %57 = vector.load %arg2[%c9_64, %c0_65, %c0_66] : memref<16x4x32xf32, #tpu.memory_space<vmem>>, vector<1x4x32xf32>
    %58 = vector.shape_cast %57 : vector<1x4x32xf32> to vector<4x32xf32>
    %cst_67 = arith.constant dense<0.000000e+00> : vector<56x32xf32>
    %59 = tpu.matmul %56, %58, %cst_67 {dimension_numbers = #tpu.dot_dimension_numbers<[1], [0], [0], [1], [0, 0, 1, 1], [], []>} : vector<56x4xf32>, vector<4x32xf32>, vector<56x32xf32> -> vector<56x32xf32>
    %60 = arith.addf %54, %59 : vector<56x32xf32>
    %c0_68 = arith.constant 0 : index
    %c1_69 = arith.constant 1 : index
    %c1_70 = arith.constant 1 : index
    %c0_71 = arith.constant 0 : index
    %61 = vector.load %arg1[%c0_68, %c1_69, %c1_70, %c0_71] : memref<1x32x9x4xf32, #tpu.memory_space<vmem>>, vector<1x7x8x4xf32>
    %62 = vector.shape_cast %61 : vector<1x7x8x4xf32> to vector<56x4xf32>
    %c10 = arith.constant 10 : index
    %c0_72 = arith.constant 0 : index
    %c0_73 = arith.constant 0 : index
    %63 = vector.load %arg2[%c10, %c0_72, %c0_73] : memref<16x4x32xf32, #tpu.memory_space<vmem>>, vector<1x4x32xf32>
    %64 = vector.shape_cast %63 : vector<1x4x32xf32> to vector<4x32xf32>
    %cst_74 = arith.constant dense<0.000000e+00> : vector<56x32xf32>
    %65 = tpu.matmul %62, %64, %cst_74 {dimension_numbers = #tpu.dot_dimension_numbers<[1], [0], [0], [1], [0, 0, 1, 1], [], []>} : vector<56x4xf32>, vector<4x32xf32>, vector<56x32xf32> -> vector<56x32xf32>
    %66 = arith.addf %60, %65 : vector<56x32xf32>
    %c0_75 = arith.constant 0 : index
    %c9_76 = arith.constant 9 : index
    %c1_77 = arith.constant 1 : index
    %c0_78 = arith.constant 0 : index
    %67 = vector.load %arg1[%c0_75, %c9_76, %c1_77, %c0_78] : memref<1x32x9x4xf32, #tpu.memory_space<vmem>>, vector<1x7x8x4xf32>
    %68 = vector.shape_cast %67 : vector<1x7x8x4xf32> to vector<56x4xf32>
    %c11 = arith.constant 11 : index
    %c0_79 = arith.constant 0 : index
    %c0_80 = arith.constant 0 : index
    %69 = vector.load %arg2[%c11, %c0_79, %c0_80] : memref<16x4x32xf32, #tpu.memory_space<vmem>>, vector<1x4x32xf32>
    %70 = vector.shape_cast %69 : vector<1x4x32xf32> to vector<4x32xf32>
    %cst_81 = arith.constant dense<0.000000e+00> : vector<56x32xf32>
    %71 = tpu.matmul %68, %70, %cst_81 {dimension_numbers = #tpu.dot_dimension_numbers<[1], [0], [0], [1], [0, 0, 1, 1], [], []>} : vector<56x4xf32>, vector<4x32xf32>, vector<56x32xf32> -> vector<56x32xf32>
    %72 = arith.addf %66, %71 : vector<56x32xf32>
    %c0_82 = arith.constant 0 : index
    %c17 = arith.constant 17 : index
    %c0_83 = arith.constant 0 : index
    %c0_84 = arith.constant 0 : index
    %73 = vector.load %arg1[%c0_82, %c17, %c0_83, %c0_84] : memref<1x32x9x4xf32, #tpu.memory_space<vmem>>, vector<1x7x8x4xf32>
    %74 = vector.shape_cast %73 : vector<1x7x8x4xf32> to vector<56x4xf32>
    %c12 = arith.constant 12 : index
    %c0_85 = arith.constant 0 : index
    %c0_86 = arith.constant 0 : index
    %75 = vector.load %arg2[%c12, %c0_85, %c0_86] : memref<16x4x32xf32, #tpu.memory_space<vmem>>, vector<1x4x32xf32>
    %76 = vector.shape_cast %75 : vector<1x4x32xf32> to vector<4x32xf32>
    %cst_87 = arith.constant dense<0.000000e+00> : vector<56x32xf32>
    %77 = tpu.matmul %74, %76, %cst_87 {dimension_numbers = #tpu.dot_dimension_numbers<[1], [0], [0], [1], [0, 0, 1, 1], [], []>} : vector<56x4xf32>, vector<4x32xf32>, vector<56x32xf32> -> vector<56x32xf32>
    %78 = arith.addf %72, %77 : vector<56x32xf32>
    %c0_88 = arith.constant 0 : index
    %c25 = arith.constant 25 : index
    %c0_89 = arith.constant 0 : index
    %c0_90 = arith.constant 0 : index
    %79 = vector.load %arg1[%c0_88, %c25, %c0_89, %c0_90] : memref<1x32x9x4xf32, #tpu.memory_space<vmem>>, vector<1x7x8x4xf32>
    %80 = vector.shape_cast %79 : vector<1x7x8x4xf32> to vector<56x4xf32>
    %c13 = arith.constant 13 : index
    %c0_91 = arith.constant 0 : index
    %c0_92 = arith.constant 0 : index
    %81 = vector.load %arg2[%c13, %c0_91, %c0_92] : memref<16x4x32xf32, #tpu.memory_space<vmem>>, vector<1x4x32xf32>
    %82 = vector.shape_cast %81 : vector<1x4x32xf32> to vector<4x32xf32>
    %cst_93 = arith.constant dense<0.000000e+00> : vector<56x32xf32>
    %83 = tpu.matmul %80, %82, %cst_93 {dimension_numbers = #tpu.dot_dimension_numbers<[1], [0], [0], [1], [0, 0, 1, 1], [], []>} : vector<56x4xf32>, vector<4x32xf32>, vector<56x32xf32> -> vector<56x32xf32>
    %84 = arith.addf %78, %83 : vector<56x32xf32>
    %c0_94 = arith.constant 0 : index
    %c17_95 = arith.constant 17 : index
    %c1_96 = arith.constant 1 : index
    %c0_97 = arith.constant 0 : index
    %85 = vector.load %arg1[%c0_94, %c17_95, %c1_96, %c0_97] : memref<1x32x9x4xf32, #tpu.memory_space<vmem>>, vector<1x7x8x4xf32>
    %86 = vector.shape_cast %85 : vector<1x7x8x4xf32> to vector<56x4xf32>
    %c14 = arith.constant 14 : index
    %c0_98 = arith.constant 0 : index
    %c0_99 = arith.constant 0 : index
    %87 = vector.load %arg2[%c14, %c0_98, %c0_99] : memref<16x4x32xf32, #tpu.memory_space<vmem>>, vector<1x4x32xf32>
    %88 = vector.shape_cast %87 : vector<1x4x32xf32> to vector<4x32xf32>
    %cst_100 = arith.constant dense<0.000000e+00> : vector<56x32xf32>
    %89 = tpu.matmul %86, %88, %cst_100 {dimension_numbers = #tpu.dot_dimension_numbers<[1], [0], [0], [1], [0, 0, 1, 1], [], []>} : vector<56x4xf32>, vector<4x32xf32>, vector<56x32xf32> -> vector<56x32xf32>
    %90 = arith.addf %84, %89 : vector<56x32xf32>
    %c0_101 = arith.constant 0 : index
    %c25_102 = arith.constant 25 : index
    %c1_103 = arith.constant 1 : index
    %c0_104 = arith.constant 0 : index
    %91 = vector.load %arg1[%c0_101, %c25_102, %c1_103, %c0_104] : memref<1x32x9x4xf32, #tpu.memory_space<vmem>>, vector<1x7x8x4xf32>
    %92 = vector.shape_cast %91 : vector<1x7x8x4xf32> to vector<56x4xf32>
    %c15 = arith.constant 15 : index
    %c0_105 = arith.constant 0 : index
    %c0_106 = arith.constant 0 : index
    %93 = vector.load %arg2[%c15, %c0_105, %c0_106] : memref<16x4x32xf32, #tpu.memory_space<vmem>>, vector<1x4x32xf32>
    %94 = vector.shape_cast %93 : vector<1x4x32xf32> to vector<4x32xf32>
    %cst_107 = arith.constant dense<0.000000e+00> : vector<56x32xf32>
    %95 = tpu.matmul %92, %94, %cst_107 {dimension_numbers = #tpu.dot_dimension_numbers<[1], [0], [0], [1], [0, 0, 1, 1], [], []>} : vector<56x4xf32>, vector<4x32xf32>, vector<56x32xf32> -> vector<56x32xf32>
    %96 = arith.addf %90, %95 : vector<56x32xf32>
    %c0_108 = arith.constant 0 : index
    %c0_109 = arith.constant 0 : index
    %97 = vector.load %arg3[%c0_108, %c0_109] : memref<1x32xf32, #tpu.memory_space<vmem>>, vector<1x32xf32>
    %98 = vector.broadcast %97 : vector<1x32xf32> to vector<56x32xf32>
    %99 = arith.addf %96, %98 : vector<56x32xf32>
    %cst_110 = arith.constant 0.000000e+00 : f32
    %100 = vector.broadcast %cst_110 : f32 to vector<56x32xf32>
    %101 = arith.maximumf %99, %100 : vector<56x32xf32>
    %c0_111 = arith.constant 0 : index
    %c0_112 = arith.constant 0 : index
    %102 = vector.load %arg4[%c0_111, %c0_112] : memref<56x32xf32, #tpu.memory_space<vmem>>, vector<56x32xf32>
    tpu.vector_store %arg4[%c0_111, %c0_112], %101 {strides = array<i32>} : memref<56x32xf32, #tpu.memory_space<vmem>>, vector<56x32xf32>,
    return
  }
  func.func @transform_0(%arg0: i32) -> (i32, i32, i32, i32) {
    %c0_i32 = arith.constant 0 : i32
    %c0_i32_0 = arith.constant 0 : i32
    %c0_i32_1 = arith.constant 0 : i32
    %c0_i32_2 = arith.constant 0 : i32
    return %arg0, %c0_i32, %c0_i32_0, %c0_i32_1 : i32, i32, i32, i32
  }
  func.func @transform_1(%arg0: i32) -> (i32, i32, i32) {
    %c0_i32 = arith.constant 0 : i32
    %c0_i32_0 = arith.constant 0 : i32
    %c0_i32_1 = arith.constant 0 : i32
    %c0_i32_2 = arith.constant 0 : i32
    return %c0_i32, %c0_i32_0, %c0_i32_1 : i32, i32, i32
  }
  func.func @transform_2(%arg0: i32) -> (i32, i32) {
    %c0_i32 = arith.constant 0 : i32
    %c0_i32_0 = arith.constant 0 : i32
    %c0_i32_1 = arith.constant 0 : i32
    return %c0_i32, %c0_i32_0 : i32, i32
  }
  func.func @transform_3(%arg0: i32) -> (i32, i32) {
    %c0_i32 = arith.constant 0 : i32
    %c0_i32_0 = arith.constant 0 : i32
    return %arg0, %c0_i32 : i32, i32
  }
}

module attributes {stable_mosaic.version = 11 : i64} {
  func.func @_conv_relu_kernel(%arg0: i32, %arg1: memref<1x7x10x32xf32, #tpu.memory_space<vmem>>, %arg2: memref<9x32x64xf32, #tpu.memory_space<vmem>>, %arg3: memref<1x64xf32, #tpu.memory_space<vmem>>, %arg4: memref<40x64xf32, #tpu.memory_space<vmem>>) attributes {dimension_semantics = [#tpu.dimension_semantics<parallel>], iteration_bounds = array<i64: 2>, scalar_prefetch = 0 : i64, scratch_operands = 0 : i64, tpu.core_type = #tpu.core_type<tc>, window_params = [{transform_indices = @transform_0, window_bounds = array<i64: 1, 7, 10, 32>}, {pipeline_mode = #tpu.pipeline_mode<synchronous>, transform_indices = @transform_1, window_bounds = array<i64: 9, 32, 64>}, {pipeline_mode = #tpu.pipeline_mode<synchronous>, transform_indices = @transform_2, window_bounds = array<i64: 1, 64>}, {transform_indices = @transform_3, window_bounds = array<i64: 40, 64>}]} {
    %cst = arith.constant 0.000000e+00 : f32
    %0 = vector.broadcast %cst : f32 to vector<40x64xf32>
    %c0 = arith.constant 0 : index
    %c0_0 = arith.constant 0 : index
    %c0_1 = arith.constant 0 : index
    %c0_2 = arith.constant 0 : index
    %1 = vector.load %arg1[%c0, %c0_0, %c0_1, %c0_2] : memref<1x7x10x32xf32, #tpu.memory_space<vmem>>, vector<1x5x8x32xf32>
    %2 = vector.shape_cast %1 : vector<1x5x8x32xf32> to vector<40x32xf32>
    %c0_3 = arith.constant 0 : index
    %c0_4 = arith.constant 0 : index
    %c0_5 = arith.constant 0 : index
    %3 = vector.load %arg2[%c0_3, %c0_4, %c0_5] : memref<9x32x64xf32, #tpu.memory_space<vmem>>, vector<1x32x64xf32>
    %4 = vector.shape_cast %3 : vector<1x32x64xf32> to vector<32x64xf32>
    %cst_6 = arith.constant dense<0.000000e+00> : vector<40x64xf32>
    %5 = tpu.matmul %2, %4, %cst_6 {dimension_numbers = #tpu.dot_dimension_numbers<[1], [0], [0], [1], [0, 0, 1, 1], [], []>} : vector<40x32xf32>, vector<32x64xf32>, vector<40x64xf32> -> vector<40x64xf32>
    %6 = arith.addf %0, %5 : vector<40x64xf32>
    %c0_7 = arith.constant 0 : index
    %c0_8 = arith.constant 0 : index
    %c1 = arith.constant 1 : index
    %c0_9 = arith.constant 0 : index
    %7 = vector.load %arg1[%c0_7, %c0_8, %c1, %c0_9] : memref<1x7x10x32xf32, #tpu.memory_space<vmem>>, vector<1x5x8x32xf32>
    %8 = vector.shape_cast %7 : vector<1x5x8x32xf32> to vector<40x32xf32>
    %c1_10 = arith.constant 1 : index
    %c0_11 = arith.constant 0 : index
    %c0_12 = arith.constant 0 : index
    %9 = vector.load %arg2[%c1_10, %c0_11, %c0_12] : memref<9x32x64xf32, #tpu.memory_space<vmem>>, vector<1x32x64xf32>
    %10 = vector.shape_cast %9 : vector<1x32x64xf32> to vector<32x64xf32>
    %cst_13 = arith.constant dense<0.000000e+00> : vector<40x64xf32>
    %11 = tpu.matmul %8, %10, %cst_13 {dimension_numbers = #tpu.dot_dimension_numbers<[1], [0], [0], [1], [0, 0, 1, 1], [], []>} : vector<40x32xf32>, vector<32x64xf32>, vector<40x64xf32> -> vector<40x64xf32>
    %12 = arith.addf %6, %11 : vector<40x64xf32>
    %c0_14 = arith.constant 0 : index
    %c0_15 = arith.constant 0 : index
    %c2 = arith.constant 2 : index
    %c0_16 = arith.constant 0 : index
    %13 = vector.load %arg1[%c0_14, %c0_15, %c2, %c0_16] : memref<1x7x10x32xf32, #tpu.memory_space<vmem>>, vector<1x5x8x32xf32>
    %14 = vector.shape_cast %13 : vector<1x5x8x32xf32> to vector<40x32xf32>
    %c2_17 = arith.constant 2 : index
    %c0_18 = arith.constant 0 : index
    %c0_19 = arith.constant 0 : index
    %15 = vector.load %arg2[%c2_17, %c0_18, %c0_19] : memref<9x32x64xf32, #tpu.memory_space<vmem>>, vector<1x32x64xf32>
    %16 = vector.shape_cast %15 : vector<1x32x64xf32> to vector<32x64xf32>
    %cst_20 = arith.constant dense<0.000000e+00> : vector<40x64xf32>
    %17 = tpu.matmul %14, %16, %cst_20 {dimension_numbers = #tpu.dot_dimension_numbers<[1], [0], [0], [1], [0, 0, 1, 1], [], []>} : vector<40x32xf32>, vector<32x64xf32>, vector<40x64xf32> -> vector<40x64xf32>
    %18 = arith.addf %12, %17 : vector<40x64xf32>
    %c0_21 = arith.constant 0 : index
    %c1_22 = arith.constant 1 : index
    %c0_23 = arith.constant 0 : index
    %c0_24 = arith.constant 0 : index
    %19 = vector.load %arg1[%c0_21, %c1_22, %c0_23, %c0_24] : memref<1x7x10x32xf32, #tpu.memory_space<vmem>>, vector<1x5x8x32xf32>
    %20 = vector.shape_cast %19 : vector<1x5x8x32xf32> to vector<40x32xf32>
    %c3 = arith.constant 3 : index
    %c0_25 = arith.constant 0 : index
    %c0_26 = arith.constant 0 : index
    %21 = vector.load %arg2[%c3, %c0_25, %c0_26] : memref<9x32x64xf32, #tpu.memory_space<vmem>>, vector<1x32x64xf32>
    %22 = vector.shape_cast %21 : vector<1x32x64xf32> to vector<32x64xf32>
    %cst_27 = arith.constant dense<0.000000e+00> : vector<40x64xf32>
    %23 = tpu.matmul %20, %22, %cst_27 {dimension_numbers = #tpu.dot_dimension_numbers<[1], [0], [0], [1], [0, 0, 1, 1], [], []>} : vector<40x32xf32>, vector<32x64xf32>, vector<40x64xf32> -> vector<40x64xf32>
    %24 = arith.addf %18, %23 : vector<40x64xf32>
    %c0_28 = arith.constant 0 : index
    %c1_29 = arith.constant 1 : index
    %c1_30 = arith.constant 1 : index
    %c0_31 = arith.constant 0 : index
    %25 = vector.load %arg1[%c0_28, %c1_29, %c1_30, %c0_31] : memref<1x7x10x32xf32, #tpu.memory_space<vmem>>, vector<1x5x8x32xf32>
    %26 = vector.shape_cast %25 : vector<1x5x8x32xf32> to vector<40x32xf32>
    %c4 = arith.constant 4 : index
    %c0_32 = arith.constant 0 : index
    %c0_33 = arith.constant 0 : index
    %27 = vector.load %arg2[%c4, %c0_32, %c0_33] : memref<9x32x64xf32, #tpu.memory_space<vmem>>, vector<1x32x64xf32>
    %28 = vector.shape_cast %27 : vector<1x32x64xf32> to vector<32x64xf32>
    %cst_34 = arith.constant dense<0.000000e+00> : vector<40x64xf32>
    %29 = tpu.matmul %26, %28, %cst_34 {dimension_numbers = #tpu.dot_dimension_numbers<[1], [0], [0], [1], [0, 0, 1, 1], [], []>} : vector<40x32xf32>, vector<32x64xf32>, vector<40x64xf32> -> vector<40x64xf32>
    %30 = arith.addf %24, %29 : vector<40x64xf32>
    %c0_35 = arith.constant 0 : index
    %c1_36 = arith.constant 1 : index
    %c2_37 = arith.constant 2 : index
    %c0_38 = arith.constant 0 : index
    %31 = vector.load %arg1[%c0_35, %c1_36, %c2_37, %c0_38] : memref<1x7x10x32xf32, #tpu.memory_space<vmem>>, vector<1x5x8x32xf32>
    %32 = vector.shape_cast %31 : vector<1x5x8x32xf32> to vector<40x32xf32>
    %c5 = arith.constant 5 : index
    %c0_39 = arith.constant 0 : index
    %c0_40 = arith.constant 0 : index
    %33 = vector.load %arg2[%c5, %c0_39, %c0_40] : memref<9x32x64xf32, #tpu.memory_space<vmem>>, vector<1x32x64xf32>
    %34 = vector.shape_cast %33 : vector<1x32x64xf32> to vector<32x64xf32>
    %cst_41 = arith.constant dense<0.000000e+00> : vector<40x64xf32>
    %35 = tpu.matmul %32, %34, %cst_41 {dimension_numbers = #tpu.dot_dimension_numbers<[1], [0], [0], [1], [0, 0, 1, 1], [], []>} : vector<40x32xf32>, vector<32x64xf32>, vector<40x64xf32> -> vector<40x64xf32>
    %36 = arith.addf %30, %35 : vector<40x64xf32>
    %c0_42 = arith.constant 0 : index
    %c2_43 = arith.constant 2 : index
    %c0_44 = arith.constant 0 : index
    %c0_45 = arith.constant 0 : index
    %37 = vector.load %arg1[%c0_42, %c2_43, %c0_44, %c0_45] : memref<1x7x10x32xf32, #tpu.memory_space<vmem>>, vector<1x5x8x32xf32>
    %38 = vector.shape_cast %37 : vector<1x5x8x32xf32> to vector<40x32xf32>
    %c6 = arith.constant 6 : index
    %c0_46 = arith.constant 0 : index
    %c0_47 = arith.constant 0 : index
    %39 = vector.load %arg2[%c6, %c0_46, %c0_47] : memref<9x32x64xf32, #tpu.memory_space<vmem>>, vector<1x32x64xf32>
    %40 = vector.shape_cast %39 : vector<1x32x64xf32> to vector<32x64xf32>
    %cst_48 = arith.constant dense<0.000000e+00> : vector<40x64xf32>
    %41 = tpu.matmul %38, %40, %cst_48 {dimension_numbers = #tpu.dot_dimension_numbers<[1], [0], [0], [1], [0, 0, 1, 1], [], []>} : vector<40x32xf32>, vector<32x64xf32>, vector<40x64xf32> -> vector<40x64xf32>
    %42 = arith.addf %36, %41 : vector<40x64xf32>
    %c0_49 = arith.constant 0 : index
    %c2_50 = arith.constant 2 : index
    %c1_51 = arith.constant 1 : index
    %c0_52 = arith.constant 0 : index
    %43 = vector.load %arg1[%c0_49, %c2_50, %c1_51, %c0_52] : memref<1x7x10x32xf32, #tpu.memory_space<vmem>>, vector<1x5x8x32xf32>
    %44 = vector.shape_cast %43 : vector<1x5x8x32xf32> to vector<40x32xf32>
    %c7 = arith.constant 7 : index
    %c0_53 = arith.constant 0 : index
    %c0_54 = arith.constant 0 : index
    %45 = vector.load %arg2[%c7, %c0_53, %c0_54] : memref<9x32x64xf32, #tpu.memory_space<vmem>>, vector<1x32x64xf32>
    %46 = vector.shape_cast %45 : vector<1x32x64xf32> to vector<32x64xf32>
    %cst_55 = arith.constant dense<0.000000e+00> : vector<40x64xf32>
    %47 = tpu.matmul %44, %46, %cst_55 {dimension_numbers = #tpu.dot_dimension_numbers<[1], [0], [0], [1], [0, 0, 1, 1], [], []>} : vector<40x32xf32>, vector<32x64xf32>, vector<40x64xf32> -> vector<40x64xf32>
    %48 = arith.addf %42, %47 : vector<40x64xf32>
    %c0_56 = arith.constant 0 : index
    %c2_57 = arith.constant 2 : index
    %c2_58 = arith.constant 2 : index
    %c0_59 = arith.constant 0 : index
    %49 = vector.load %arg1[%c0_56, %c2_57, %c2_58, %c0_59] : memref<1x7x10x32xf32, #tpu.memory_space<vmem>>, vector<1x5x8x32xf32>
    %50 = vector.shape_cast %49 : vector<1x5x8x32xf32> to vector<40x32xf32>
    %c8 = arith.constant 8 : index
    %c0_60 = arith.constant 0 : index
    %c0_61 = arith.constant 0 : index
    %51 = vector.load %arg2[%c8, %c0_60, %c0_61] : memref<9x32x64xf32, #tpu.memory_space<vmem>>, vector<1x32x64xf32>
    %52 = vector.shape_cast %51 : vector<1x32x64xf32> to vector<32x64xf32>
    %cst_62 = arith.constant dense<0.000000e+00> : vector<40x64xf32>
    %53 = tpu.matmul %50, %52, %cst_62 {dimension_numbers = #tpu.dot_dimension_numbers<[1], [0], [0], [1], [0, 0, 1, 1], [], []>} : vector<40x32xf32>, vector<32x64xf32>, vector<40x64xf32> -> vector<40x64xf32>
    %54 = arith.addf %48, %53 : vector<40x64xf32>
    %c0_63 = arith.constant 0 : index
    %c0_64 = arith.constant 0 : index
    %55 = vector.load %arg3[%c0_63, %c0_64] : memref<1x64xf32, #tpu.memory_space<vmem>>, vector<1x64xf32>
    %56 = vector.broadcast %55 : vector<1x64xf32> to vector<40x64xf32>
    %57 = arith.addf %54, %56 : vector<40x64xf32>
    %cst_65 = arith.constant 0.000000e+00 : f32
    %58 = vector.broadcast %cst_65 : f32 to vector<40x64xf32>
    %59 = arith.maximumf %57, %58 : vector<40x64xf32>
    %c0_66 = arith.constant 0 : index
    %c0_67 = arith.constant 0 : index
    %60 = vector.load %arg4[%c0_66, %c0_67] : memref<40x64xf32, #tpu.memory_space<vmem>>, vector<40x64xf32>
    tpu.vector_store %arg4[%c0_66, %c0_67], %59 {strides = array<i32>} : memref<40x64xf32, #tpu.memory_space<vmem>>, vector<40x64xf32>,
    return
  }
  func.func @transform_0(%arg0: i32) -> (i32, i32, i32, i32) {
    %c0_i32 = arith.constant 0 : i32
    %c0_i32_0 = arith.constant 0 : i32
    %c0_i32_1 = arith.constant 0 : i32
    %c0_i32_2 = arith.constant 0 : i32
    return %arg0, %c0_i32, %c0_i32_0, %c0_i32_1 : i32, i32, i32, i32
  }
  func.func @transform_1(%arg0: i32) -> (i32, i32, i32) {
    %c0_i32 = arith.constant 0 : i32
    %c0_i32_0 = arith.constant 0 : i32
    %c0_i32_1 = arith.constant 0 : i32
    %c0_i32_2 = arith.constant 0 : i32
    return %c0_i32, %c0_i32_0, %c0_i32_1 : i32, i32, i32
  }
  func.func @transform_2(%arg0: i32) -> (i32, i32) {
    %c0_i32 = arith.constant 0 : i32
    %c0_i32_0 = arith.constant 0 : i32
    %c0_i32_1 = arith.constant 0 : i32
    return %c0_i32, %c0_i32_0 : i32, i32
  }
  func.func @transform_3(%arg0: i32) -> (i32, i32) {
    %c0_i32 = arith.constant 0 : i32
    %c0_i32_0 = arith.constant 0 : i32
    return %arg0, %c0_i32 : i32, i32
  }
}

</mosaic_0001>

<llo_original>
// kernel: cnn_forward.3
$region0: #{cnn_forward.3}
  #allocation0 [shape = 'u32[]', space=smem, size = 0x4, offset = 0x4, fixed_abs, tag = 'smem constant byte address 0x4 - core index']
  #allocation1 [shape = 'u32[72,128]{1,0:T(1,128)}', space=vmem, size = 0x9000, scoped, tag = 'internal scratch']
  %s0 = inlined_call_operand.vmem [shape: f32[2,7,10,32], index: 0, kind: input, shape index: {}]
  %s1 = inlined_call_operand.vmem [shape: f32[9,32,64], index: 1, kind: input, shape index: {}]
  %s2 = inlined_call_operand.vmem [shape: f32[1,64], index: 2, kind: input, shape index: {}]
  %s3 = inlined_call_operand.vmem [shape: f32[80,64], index: 3, kind: output, shape index: {}]
  %s4 = sld [smem:[#allocation0]]
  $region45: #{cnn_forward.3} parent=0
    _
  %s6 = ssub.s32 1, %s4
  %s7 = scalar_select 0, %s6, %s4
  loop: start=0, step=1, limit=4
  $region2: #{cnn_forward.3} parent=0 // loop_pre_header
    _
  $region3: #{cnn_forward.3} parent=0 // loop_header
    %s9 = sphi 0, %s13
    %p10 = scmp.ge.s32.totalorder %s9, 4
    %s19 = sphi 0, %s21
    %s22 = sphi 0, %s19
    %s23 = sphi 0, %s22
    %s39 = sphi 0, %s23
    %s43 = sphi 0, %s43
    %s45 = sphi 0, %s43
    %s46 = sphi 0, %s45
    %s60 = sphi 0, %s46
    %s64 = sphi 0, %s64
    %s66 = sphi 0, %s64
    %s67 = sphi 0, %s66
    %s81 = sphi 0, %s67
    %s87 = sphi 0, %s89
    %s90 = sphi 0, %s87
    %s91 = sphi 0, %s90
    %s107 = sphi 0, %s91
  $region4: #{cnn_forward.3} parent=0 // loop_header_branch
    %12 = sbr.rel (%p10) target = $region8
  $region5: #{cnn_forward.3} parent=0 // loop_body
    %s14 = ssub.s32 %s9, 1
    %s15 = ssub.s32 %s9, 2
    %s16 = sadd.s32 %s9, 1
    %s17 = ssub.s32 %s9, %s16
    %p18 = scmp.eq.s32.totalorder %s17, 0
    %s20 = sadd.s32 %s19, 1
    %s21 = scalar_select %p18, %s19, %s20
    %p24 = pneg %p18
    %p25 = scmp.eq.s32.totalorder %s9, 1
    %p26 = por %p24, %p25
    %p27 = scmp.ne.s32.totalorder %s19, %s22
    %p28 = scmp.eq.s32.totalorder %s9, 0
    %p29 = por %p27, %p28
    %p30 = scmp.ne.s32.totalorder %s19, %s22
    %p31 = scmp.eq.s32.totalorder %s14, 1
    %p32 = por %p30, %p31
    %p33 = scmp.ne.s32.totalorder %s22, %s23
    %p34 = scmp.eq.s32.totalorder %s14, 0
    %p35 = por %p33, %p34
    %p36 = scmp.ne.s32.totalorder %s22, %s23
    %p37 = scmp.eq.s32.totalorder %s15, 1
    %p38 = por %p36, %p37
    %p40 = scmp.ne.s32.totalorder %s23, %s39
    %p41 = scmp.eq.s32.totalorder %s15, 0
    %p42 = por %p40, %p41
    %s44 = sadd.s32 %s43, 1
    %p47 = scmp.eq.s32.totalorder %s9, 1
    %p48 = scmp.ne.s32.totalorder %s43, %s45
    %p49 = scmp.eq.s32.totalorder %s9, 0
    %p50 = por %p48, %p49
    %p51 = scmp.ne.s32.totalorder %s43, %s45
    %p52 = scmp.eq.s32.totalorder %s14, 1
    %p53 = por %p51, %p52
    %p54 = scmp.ne.s32.totalorder %s45, %s46
    %p55 = scmp.eq.s32.totalorder %s14, 0
    %p56 = por %p54, %p55
    %p57 = scmp.ne.s32.totalorder %s45, %s46
    %p58 = scmp.eq.s32.totalorder %s15, 1
    %p59 = por %p57, %p58
    %p61 = scmp.ne.s32.totalorder %s46, %s60
    %p62 = scmp.eq.s32.totalorder %s15, 0
    %p63 = por %p61, %p62
    %s65 = sadd.s32 %s64, 1
    %p68 = scmp.eq.s32.totalorder %s9, 1
    %p69 = scmp.ne.s32.totalorder %s64, %s66
    %p70 = scmp.eq.s32.totalorder %s9, 0
    %p71 = por %p69, %p70
    %p72 = scmp.ne.s32.totalorder %s64, %s66
    %p73 = scmp.eq.s32.totalorder %s14, 1
    %p74 = por %p72, %p73
    %p75 = scmp.ne.s32.totalorder %s66, %s67
    %p76 = scmp.eq.s32.totalorder %s14, 0
    %p77 = por %p75, %p76
    %p78 = scmp.ne.s32.totalorder %s66, %s67
    %p79 = scmp.eq.s32.totalorder %s15, 1
    %p80 = por %p78, %p79
    %p82 = scmp.ne.s32.totalorder %s67, %s81
    %p83 = scmp.eq.s32.totalorder %s15, 0
    %p84 = por %p82, %p83
    %s85 = ssub.s32 %s9, %s16
    %p86 = scmp.eq.s32.totalorder %s85, 0
    %s88 = sadd.s32 %s87, 1
    %s89 = scalar_select %p86, %s87, %s88
    %p92 = pneg %p86
    %p93 = scmp.eq.s32.totalorder %s9, 1
    %p94 = por %p92, %p93
    %p95 = scmp.ne.s32.totalorder %s87, %s90
    %p96 = scmp.eq.s32.totalorder %s9, 0
    %p97 = por %p95, %p96
    %p98 = scmp.ne.s32.totalorder %s87, %s90
    %p99 = scmp.eq.s32.totalorder %s14, 1
    %p100 = por %p98, %p99
    %p101 = scmp.ne.s32.totalorder %s90, %s91
    %p102 = scmp.eq.s32.totalorder %s14, 0
    %p103 = por %p101, %p102
    %p104 = scmp.ne.s32.totalorder %s90, %s91
    %p105 = scmp.eq.s32.totalorder %s15, 1
    %p106 = por %p104, %p105
    %p108 = scmp.ne.s32.totalorder %s91, %s107
    %p109 = scmp.eq.s32.totalorder %s15, 0
    %p110 = por %p108, %p109
    %p111 = scmp.le.s32.totalorder 1, %s9
    %p112 = scmp.lt.s32.totalorder %s9, 3
    %p113 = pnand %p111, %p112
    %p114 = pneg %p113
    // Predicated region
    $region9: #{cnn_forward.3} parent=5 // pred_check
      _
    $region10: #{cnn_forward.3} parent=5 // pred_check_branch
      %116 = sbr.rel (%p113) target = $region12
    $region11: #{cnn_forward.3} parent=5 // pred_region
      %s117 = ssub.s32 %s9, 1
      // Predicated region
      $region13: #{cnn_forward.3} parent=11 // pred_check
        %p118 = pneg %p56
      $region14: #{cnn_forward.3} parent=11 // pred_check_branch
        %120 = sbr.rel (%p118) target = $region16
      $region15: #{cnn_forward.3} parent=11 // pred_region
        _
      $region16: #{cnn_forward.3} parent=11 // pred_fallthru
        _
      // Predicated region
      $region17: #{cnn_forward.3} parent=11 // pred_check
        %p121 = pneg %p77
      $region18: #{cnn_forward.3} parent=11 // pred_check_branch
        %123 = sbr.rel (%p121) target = $region20
      $region19: #{cnn_forward.3} parent=11 // pred_region
        _
      $region20: #{cnn_forward.3} parent=11 // pred_fallthru
        _
    $region12: #{cnn_forward.3} parent=5 // pred_fallthru
      _
    %p124 = scmp.lt.s32.totalorder %s9, 2
    // Predicated region
    $region21: #{cnn_forward.3} parent=5 // pred_check
      %p125 = pneg %p124
    $region22: #{cnn_forward.3} parent=5 // pred_check_branch
      %127 = sbr.rel (%p125) target = $region24
    $region23: #{cnn_forward.3} parent=5 // pred_region
      // Predicated region
      $region25: #{cnn_forward.3} parent=23 // pred_check
        %p128 = pneg %p29
      $region26: #{cnn_forward.3} parent=23 // pred_check_branch
        %130 = sbr.rel (%p128) target = $region28
      $region27: #{cnn_forward.3} parent=23 // pred_region
        %p131 = scmp.lt.s32.totalorder %s9, 1
        %s132 = scalar_select %p131, %s9, 1
        %s133 = smul.addr %s132, 14
        %s134 = smul.addr %s133, 8
        %s135 = scalar_lea.vmem %s0, %s134
      $region28: #{cnn_forward.3} parent=23 // pred_fallthru
        _
    $region24: #{cnn_forward.3} parent=5 // pred_fallthru
      _
    %p136 = scmp.le.s32.totalorder 1, %s9
    %p137 = scmp.lt.s32.totalorder %s9, 3
    %p138 = pnand %p136, %p137
    %p139 = pneg %p138
    // Predicated region
    $region29: #{cnn_forward.3} parent=5 // pred_check
      _
    $region30: #{cnn_forward.3} parent=5 // pred_check_branch
      %141 = sbr.rel (%p138) target = $region32
    $region31: #{cnn_forward.3} parent=5 // pred_region
      %s142 = ssub.s32 %s9, 1
      %p143 = scmp.lt.s32.totalorder %s14, 1
      %s144 = scalar_select %p143, %s14, 1
      %s145 = smul.addr %s144, 14
      %s146 = smul.addr %s145, 8
      %s147 = scalar_lea.vmem %s0, %s146
      %p148 = pneg %p35
      %p149 = pneg %p32
      %p150 = pneg %p56
      %p151 = pneg %p53
      %p152 = pneg %p77
      %p153 = pneg %p74
      %p154 = pneg %p103
      %p155 = pneg %p100
      %s156 = smul.u32 5, %s14
      %p157 = scmp.lt.s32.totalorder %s156, 9
      %s158 = scalar_select %p157, %s156, 9
      %s159 = smul.addr %s158, 8
      %s160 = scalar_lea.vmem %s3, %s159
      %p161 = scmp.lt.s32.totalorder %s14, 1
      %s162 = scalar_select %p161, %s14, 1
      %s163 = smul.addr %s162, 14
      %s164 = smul.addr %s163, 8
      %s165 = scalar_lea.vmem %s0, %s164
      %s166 = smul.u32 5, %s14
      %p167 = scmp.lt.s32.totalorder %s166, 9
      %s168 = scalar_select %p167, %s166, 9
      %s169 = smul.addr %s168, 8
      %s170 = scalar_lea.vmem %s3, %s169
      %s171 = smul.u32 5, %s14
      %v172 = vld [vmem:[%s165] sm:$0xff]
      %v173 = vld [vmem:[%s165 + $0x10] sm:$0xff]
      %v174 = vld [vmem:[%s165 + $0x20] sm:$0xff]
      %v175 = vld [vmem:[%s165 + $0x30] sm:$0xff]
      %v176 = vld [vmem:[%s165 + $0x40] sm:$0xff]
      %v177 = vld [vmem:[%s1] sm:$0xff]
      %v178 = vld [vmem:[%s1 + $0x8] sm:$0xff]
      %v179 = vld [vmem:[%s1 + $0x10] sm:$0xff]
      %v180 = vld [vmem:[%s1 + $0x18] sm:$0xff]
      %v181 = vld [vmem:[%s165 + $0x1] sm:$0xff]
      %v182 = vld [vmem:[%s165 + $0x11] sm:$0xff]
      %v183 = vld [vmem:[%s165 + $0x21] sm:$0xff]
      %v184 = vld [vmem:[%s165 + $0x31] sm:$0xff]
      %v185 = vld [vmem:[%s165 + $0x41] sm:$0xff]
      %s186 = scalar_lea.vmem %s1, 32
      %v187 = vld [vmem:[%s186] sm:$0xff]
      %v188 = vld [vmem:[%s186 + $0x8] sm:$0xff]
      %v189 = vld [vmem:[%s186 + $0x10] sm:$0xff]
      %v190 = vld [vmem:[%s186 + $0x18] sm:$0xff]
      %vm191 = vcmask 261120
      %v193 = vsel %vm191, %v181, 0
      %v196 = vsel %vm191, %v182, 0
      %v199 = vsel %vm191, %v183, 0
      %v202 = vsel %vm191, %v184, 0
      %v205 = vsel %vm191, %v185, 0
      %207 = vmatpush.msra.mxu0 0.0
      %208 = vmatpush.msra.mxu0 0.0
      %209 = vmatpush.msra.mxu0 0.0
      %210 = vmatpush.msra.mxu0 0.0
      %211 = vmatpush.msra.mxu0 0.0
      %212 = vmatpush.msra.mxu0 0.0
      %213 = vmatpush.msra.mxu0 0.0
      %214 = vmatpush.msra.mxu0 0.0
      %215 = vmatpush.msra.mxu0 0.0
      %216 = vmatpush.msra.mxu0 0.0
      %217 = vmatpush.msra.mxu0 0.0
      %218 = vmatpush.msra.mxu0 0.0
      %219 = vmatpush.msra.mxu0 %v190
      %220 = vmatpush.msra.mxu0 %v189
      %221 = vmatpush.msra.mxu0 %v188
      %222 = vmatpush.msra.mxu0 %v187
      %223 = vmatmul.f32.gmra.mxu0 %v193
      %v224 = vpop.f32.mrf.mxu0
      %v225 = vadd.f32 0.0, %v224
      %226 = vmatmul.f32.gmra.mxu0 %v196
      %v227 = vpop.f32.mrf.mxu0
      %v228 = vadd.f32 0.0, %v227
      %229 = vmatmul.f32.gmra.mxu0 %v199
      %v230 = vpop.f32.mrf.mxu0
      %v231 = vadd.f32 0.0, %v230
      %232 = vmatmul.f32.gmra.mxu0 %v202
      %v233 = vpop.f32.mrf.mxu0
      %v234 = vadd.f32 0.0, %v233
      %235 = vmatmul.f32.gmra.mxu0 %v205
      %v236 = vpop.f32.mrf.mxu0
      %v237 = vadd.f32 0.0, %v236
      %238 = vdwg.mxu0
      %v240 = vsel %vm191, %v172, 0
      %v243 = vsel %vm191, %v173, 0
      %v246 = vsel %vm191, %v174, 0
      %v249 = vsel %vm191, %v175, 0
      %v252 = vsel %vm191, %v176, 0
      %254 = vmatpush.msra.mxu0 0.0
      %255 = vmatpush.msra.mxu0 0.0
      %256 = vmatpush.msra.mxu0 0.0
      %257 = vmatpush.msra.mxu0 0.0
      %258 = vmatpush.msra.mxu0 0.0
      %259 = vmatpush.msra.mxu0 0.0
      %260 = vmatpush.msra.mxu0 0.0
      %261 = vmatpush.msra.mxu0 0.0
      %262 = vmatpush.msra.mxu0 0.0
      %263 = vmatpush.msra.mxu0 0.0
      %264 = vmatpush.msra.mxu0 0.0
      %265 = vmatpush.msra.mxu0 0.0
      %266 = vmatpush.msra.mxu0 %v180
      %267 = vmatpush.msra.mxu0 %v179
      %268 = vmatpush.msra.mxu0 %v178
      %269 = vmatpush.msra.mxu0 %v177
      %270 = vmatmul.f32.gmra.mxu0 %v240
      %v271 = vpop.f32.mrf.mxu0
      %v272 = vadd.f32 %v225, %v271
      %273 = vmatmul.f32.gmra.mxu0 %v243
      %v274 = vpop.f32.mrf.mxu0
      %v275 = vadd.f32 %v228, %v274
      %276 = vmatmul.f32.gmra.mxu0 %v246
      %v277 = vpop.f32.mrf.mxu0
      %v278 = vadd.f32 %v231, %v277
      %279 = vmatmul.f32.gmra.mxu0 %v249
      %v280 = vpop.f32.mrf.mxu0
      %v281 = vadd.f32 %v234, %v280
      %282 = vmatmul.f32.gmra.mxu0 %v252
      %v283 = vpop.f32.mrf.mxu0
      %v284 = vadd.f32 %v237, %v283
      %285 = vdwg.mxu0
      %v286 = vld [vmem:[%s165 + $0x2] sm:$0xff]
      %v287 = vld [vmem:[%s165 + $0x12] sm:$0xff]
      %v288 = vld [vmem:[%s165 + $0x22] sm:$0xff]
      %v289 = vld [vmem:[%s165 + $0x32] sm:$0xff]
      %v290 = vld [vmem:[%s165 + $0x42] sm:$0xff]
      %s291 = scalar_lea.vmem %s1, 64
      %v292 = vld [vmem:[%s291] sm:$0xff]
      %v293 = vld [vmem:[%s291 + $0x8] sm:$0xff]
      %v294 = vld [vmem:[%s291 + $0x10] sm:$0xff]
      %v295 = vld [vmem:[%s291 + $0x18] sm:$0xff]
      %v297 = vsel %vm191, %v286, 0
      %v300 = vsel %vm191, %v287, 0
      %v303 = vsel %vm191, %v288, 0
      %v306 = vsel %vm191, %v289, 0
      %v309 = vsel %vm191, %v290, 0
      %311 = vmatpush.msra.mxu0 0.0
      %312 = vmatpush.msra.mxu0 0.0
      %313 = vmatpush.msra.mxu0 0.0
      %314 = vmatpush.msra.mxu0 0.0
      %315 = vmatpush.msra.mxu0 0.0
      %316 = vmatpush.msra.mxu0 0.0
      %317 = vmatpush.msra.mxu0 0.0
      %318 = vmatpush.msra.mxu0 0.0
      %319 = vmatpush.msra.mxu0 0.0
      %320 = vmatpush.msra.mxu0 0.0
      %321 = vmatpush.msra.mxu0 0.0
      %322 = vmatpush.msra.mxu0 0.0
      %323 = vmatpush.msra.mxu0 %v295
      %324 = vmatpush.msra.mxu0 %v294
      %325 = vmatpush.msra.mxu0 %v293
      %326 = vmatpush.msra.mxu0 %v292
      %327 = vmatmul.f32.gmra.mxu0 %v297
      %v328 = vpop.f32.mrf.mxu0
      %v329 = vadd.f32 0.0, %v328
      %330 = vmatmul.f32.gmra.mxu0 %v300
      %v331 = vpop.f32.mrf.mxu0
      %v332 = vadd.f32 0.0, %v331
      %333 = vmatmul.f32.gmra.mxu0 %v303
      %v334 = vpop.f32.mrf.mxu0
      %v335 = vadd.f32 0.0, %v334
      %336 = vmatmul.f32.gmra.mxu0 %v306
      %v337 = vpop.f32.mrf.mxu0
      %v338 = vadd.f32 0.0, %v337
      %339 = vmatmul.f32.gmra.mxu0 %v309
      %v340 = vpop.f32.mrf.mxu0
      %v341 = vadd.f32 0.0, %v340
      %342 = vdwg.mxu0
      %v343 = vadd.f32 %v272, %v329
      %v344 = vadd.f32 %v275, %v332
      %v345 = vadd.f32 %v278, %v335
      %v346 = vadd.f32 %v281, %v338
      %v347 = vadd.f32 %v284, %v341
      %s348 = scalar_lea.vmem %s165, 16
      %v349 = vld [vmem:[%s348] sm:$0xff]
      %v350 = vld [vmem:[%s348 + $0x10] sm:$0xff]
      %v351 = vld [vmem:[%s348 + $0x20] sm:$0xff]
      %v352 = vld [vmem:[%s348 + $0x30] sm:$0xff]
      %v353 = vld [vmem:[%s348 + $0x40] sm:$0xff]
      %s354 = scalar_lea.vmem %s1, 96
      %v355 = vld [vmem:[%s354] sm:$0xff]
      %v356 = vld [vmem:[%s354 + $0x8] sm:$0xff]
      %v357 = vld [vmem:[%s354 + $0x10] sm:$0xff]
      %v358 = vld [vmem:[%s354 + $0x18] sm:$0xff]
      %v360 = vsel %vm191, %v349, 0
      %v363 = vsel %vm191, %v350, 0
      %v366 = vsel %vm191, %v351, 0
      %v369 = vsel %vm191, %v352, 0
      %v372 = vsel %vm191, %v353, 0
      %374 = vmatpush.msra.mxu0 0.0
      %375 = vmatpush.msra.mxu0 0.0
      %376 = vmatpush.msra.mxu0 0.0
      %377 = vmatpush.msra.mxu0 0.0
      %378 = vmatpush.msra.mxu0 0.0
      %379 = vmatpush.msra.mxu0 0.0
      %380 = vmatpush.msra.mxu0 0.0
      %381 = vmatpush.msra.mxu0 0.0
      %382 = vmatpush.msra.mxu0 0.0
      %383 = vmatpush.msra.mxu0 0.0
      %384 = vmatpush.msra.mxu0 0.0
      %385 = vmatpush.msra.mxu0 0.0
      %386 = vmatpush.msra.mxu0 %v358
      %387 = vmatpush.msra.mxu0 %v357
      %388 = vmatpush.msra.mxu0 %v356
      %389 = vmatpush.msra.mxu0 %v355
      %390 = vmatmul.f32.gmra.mxu0 %v360
      %v391 = vpop.f32.mrf.mxu0
      %v392 = vadd.f32 0.0, %v391
      %393 = vmatmul.f32.gmra.mxu0 %v363
      %v394 = vpop.f32.mrf.mxu0
      %v395 = vadd.f32 0.0, %v394
      %396 = vmatmul.f32.gmra.mxu0 %v366
      %v397 = vpop.f32.mrf.mxu0
      %v398 = vadd.f32 0.0, %v397
      %399 = vmatmul.f32.gmra.mxu0 %v369
      %v400 = vpop.f32.mrf.mxu0
      %v401 = vadd.f32 0.0, %v400
      %402 = vmatmul.f32.gmra.mxu0 %v372
      %v403 = vpop.f32.mrf.mxu0
      %v404 = vadd.f32 0.0, %v403
      %405 = vdwg.mxu0
      %v406 = vadd.f32 %v343, %v392
      %v407 = vadd.f32 %v344, %v395
      %v408 = vadd.f32 %v345, %v398
      %v409 = vadd.f32 %v346, %v401
      %v410 = vadd.f32 %v347, %v404
      %v411 = vld [vmem:[%s348 + $0x1] sm:$0xff]
      %v412 = vld [vmem:[%s348 + $0x11] sm:$0xff]
      %v413 = vld [vmem:[%s348 + $0x21] sm:$0xff]
      %v414 = vld [vmem:[%s348 + $0x31] sm:$0xff]
      %v415 = vld [vmem:[%s348 + $0x41] sm:$0xff]
      %s416 = scalar_lea.vmem %s1, 128
      %v417 = vld [vmem:[%s416] sm:$0xff]
      %v418 = vld [vmem:[%s416 + $0x8] sm:$0xff]
      %v419 = vld [vmem:[%s416 + $0x10] sm:$0xff]
      %v420 = vld [vmem:[%s416 + $0x18] sm:$0xff]
      %v422 = vsel %vm191, %v411, 0
      %v425 = vsel %vm191, %v412, 0
      %v428 = vsel %vm191, %v413, 0
      %v431 = vsel %vm191, %v414, 0
      %v434 = vsel %vm191, %v415, 0
      %436 = vmatpush.msra.mxu0 0.0
      %437 = vmatpush.msra.mxu0 0.0
      %438 = vmatpush.msra.mxu0 0.0
      %439 = vmatpush.msra.mxu0 0.0
      %440 = vmatpush.msra.mxu0 0.0
      %441 = vmatpush.msra.mxu0 0.0
      %442 = vmatpush.msra.mxu0 0.0
      %443 = vmatpush.msra.mxu0 0.0
      %444 = vmatpush.msra.mxu0 0.0
      %445 = vmatpush.msra.mxu0 0.0
      %446 = vmatpush.msra.mxu0 0.0
      %447 = vmatpush.msra.mxu0 0.0
      %448 = vmatpush.msra.mxu0 %v420
      %449 = vmatpush.msra.mxu0 %v419
      %450 = vmatpush.msra.mxu0 %v418
      %451 = vmatpush.msra.mxu0 %v417
      %452 = vmatmul.f32.gmra.mxu0 %v422
      %v453 = vpop.f32.mrf.mxu0
      %v454 = vadd.f32 0.0, %v453
      %455 = vmatmul.f32.gmra.mxu0 %v425
      %v456 = vpop.f32.mrf.mxu0
      %v457 = vadd.f32 0.0, %v456
      %458 = vmatmul.f32.gmra.mxu0 %v428
      %v459 = vpop.f32.mrf.mxu0
      %v460 = vadd.f32 0.0, %v459
      %461 = vmatmul.f32.gmra.mxu0 %v431
      %v462 = vpop.f32.mrf.mxu0
      %v463 = vadd.f32 0.0, %v462
      %464 = vmatmul.f32.gmra.mxu0 %v434
      %v465 = vpop.f32.mrf.mxu0
      %v466 = vadd.f32 0.0, %v465
      %467 = vdwg.mxu0
      %v468 = vadd.f32 %v406, %v454
      %v469 = vadd.f32 %v407, %v457
      %v470 = vadd.f32 %v408, %v460
      %v471 = vadd.f32 %v409, %v463
      %v472 = vadd.f32 %v410, %v466
      %v473 = vld [vmem:[%s348 + $0x2] sm:$0xff]
      %v474 = vld [vmem:[%s348 + $0x12] sm:$0xff]
      %v475 = vld [vmem:[%s348 + $0x22] sm:$0xff]
      %v476 = vld [vmem:[%s348 + $0x32] sm:$0xff]
      %v477 = vld [vmem:[%s348 + $0x42] sm:$0xff]
      %s478 = scalar_lea.vmem %s1, 160
      %v479 = vld [vmem:[%s478] sm:$0xff]
      %v480 = vld [vmem:[%s478 + $0x8] sm:$0xff]
      %v481 = vld [vmem:[%s478 + $0x10] sm:$0xff]
      %v482 = vld [vmem:[%s478 + $0x18] sm:$0xff]
      %v484 = vsel %vm191, %v473, 0
      %v487 = vsel %vm191, %v474, 0
      %v490 = vsel %vm191, %v475, 0
      %v493 = vsel %vm191, %v476, 0
      %v496 = vsel %vm191, %v477, 0
      %498 = vmatpush.msra.mxu0 0.0
      %499 = vmatpush.msra.mxu0 0.0
      %500 = vmatpush.msra.mxu0 0.0
      %501 = vmatpush.msra.mxu0 0.0
      %502 = vmatpush.msra.mxu0 0.0
      %503 = vmatpush.msra.mxu0 0.0
      %504 = vmatpush.msra.mxu0 0.0
      %505 = vmatpush.msra.mxu0 0.0
      %506 = vmatpush.msra.mxu0 0.0
      %507 = vmatpush.msra.mxu0 0.0
      %508 = vmatpush.msra.mxu0 0.0
      %509 = vmatpush.msra.mxu0 0.0
      %510 = vmatpush.msra.mxu0 %v482
      %511 = vmatpush.msra.mxu0 %v481
      %512 = vmatpush.msra.mxu0 %v480
      %513 = vmatpush.msra.mxu0 %v479
      %514 = vmatmul.f32.gmra.mxu0 %v484
      %v515 = vpop.f32.mrf.mxu0
      %v516 = vadd.f32 0.0, %v515
      %517 = vmatmul.f32.gmra.mxu0 %v487
      %v518 = vpop.f32.mrf.mxu0
      %v519 = vadd.f32 0.0, %v518
      %520 = vmatmul.f32.gmra.mxu0 %v490
      %v521 = vpop.f32.mrf.mxu0
      %v522 = vadd.f32 0.0, %v521
      %523 = vmatmul.f32.gmra.mxu0 %v493
      %v524 = vpop.f32.mrf.mxu0
      %v525 = vadd.f32 0.0, %v524
      %526 = vmatmul.f32.gmra.mxu0 %v496
      %v527 = vpop.f32.mrf.mxu0
      %v528 = vadd.f32 0.0, %v527
      %529 = vdwg.mxu0
      %v530 = vadd.f32 %v468, %v516
      %v531 = vadd.f32 %v469, %v519
      %v532 = vadd.f32 %v470, %v522
      %v533 = vadd.f32 %v471, %v525
      %v534 = vadd.f32 %v472, %v528
      %s535 = scalar_lea.vmem %s165, 32
      %v536 = vld [vmem:[%s535] sm:$0xff]
      %v537 = vld [vmem:[%s535 + $0x10] sm:$0xff]
      %v538 = vld [vmem:[%s535 + $0x20] sm:$0xff]
      %v539 = vld [vmem:[%s535 + $0x30] sm:$0xff]
      %v540 = vld [vmem:[%s535 + $0x40] sm:$0xff]
      %s541 = scalar_lea.vmem %s1, 192
      %v542 = vld [vmem:[%s541] sm:$0xff]
      %v543 = vld [vmem:[%s541 + $0x8] sm:$0xff]
      %v544 = vld [vmem:[%s541 + $0x10] sm:$0xff]
      %v545 = vld [vmem:[%s541 + $0x18] sm:$0xff]
      %v547 = vsel %vm191, %v536, 0
      %v550 = vsel %vm191, %v537, 0
      %v553 = vsel %vm191, %v538, 0
      %v556 = vsel %vm191, %v539, 0
      %v559 = vsel %vm191, %v540, 0
      %561 = vmatpush.msra.mxu0 0.0
      %562 = vmatpush.msra.mxu0 0.0
      %563 = vmatpush.msra.mxu0 0.0
      %564 = vmatpush.msra.mxu0 0.0
      %565 = vmatpush.msra.mxu0 0.0
      %566 = vmatpush.msra.mxu0 0.0
      %567 = vmatpush.msra.mxu0 0.0
      %568 = vmatpush.msra.mxu0 0.0
      %569 = vmatpush.msra.mxu0 0.0
      %570 = vmatpush.msra.mxu0 0.0
      %571 = vmatpush.msra.mxu0 0.0
      %572 = vmatpush.msra.mxu0 0.0
      %573 = vmatpush.msra.mxu0 %v545
      %574 = vmatpush.msra.mxu0 %v544
      %575 = vmatpush.msra.mxu0 %v543
      %576 = vmatpush.msra.mxu0 %v542
      %577 = vmatmul.f32.gmra.mxu0 %v547
      %v578 = vpop.f32.mrf.mxu0
      %v579 = vadd.f32 0.0, %v578
      %580 = vmatmul.f32.gmra.mxu0 %v550
      %v581 = vpop.f32.mrf.mxu0
      %v582 = vadd.f32 0.0, %v581
      %583 = vmatmul.f32.gmra.mxu0 %v553
      %v584 = vpop.f32.mrf.mxu0
      %v585 = vadd.f32 0.0, %v584
      %586 = vmatmul.f32.gmra.mxu0 %v556
      %v587 = vpop.f32.mrf.mxu0
      %v588 = vadd.f32 0.0, %v587
      %589 = vmatmul.f32.gmra.mxu0 %v559
      %v590 = vpop.f32.mrf.mxu0
      %v591 = vadd.f32 0.0, %v590
      %592 = vdwg.mxu0
      %v593 = vadd.f32 %v530, %v579
      %v594 = vadd.f32 %v531, %v582
      %v595 = vadd.f32 %v532, %v585
      %v596 = vadd.f32 %v533, %v588
      %v597 = vadd.f32 %v534, %v591
      %v598 = vld [vmem:[%s535 + $0x1] sm:$0xff]
      %v599 = vld [vmem:[%s535 + $0x11] sm:$0xff]
      %v600 = vld [vmem:[%s535 + $0x21] sm:$0xff]
      %v601 = vld [vmem:[%s535 + $0x31] sm:$0xff]
      %v602 = vld [vmem:[%s535 + $0x41] sm:$0xff]
      %s603 = scalar_lea.vmem %s1, 224
      %v604 = vld [vmem:[%s603] sm:$0xff]
      %v605 = vld [vmem:[%s603 + $0x8] sm:$0xff]
      %v606 = vld [vmem:[%s603 + $0x10] sm:$0xff]
      %v607 = vld [vmem:[%s603 + $0x18] sm:$0xff]
      %v609 = vsel %vm191, %v598, 0
      %v612 = vsel %vm191, %v599, 0
      %v615 = vsel %vm191, %v600, 0
      %v618 = vsel %vm191, %v601, 0
      %v621 = vsel %vm191, %v602, 0
      %623 = vmatpush.msra.mxu0 0.0
      %624 = vmatpush.msra.mxu0 0.0
      %625 = vmatpush.msra.mxu0 0.0
      %626 = vmatpush.msra.mxu0 0.0
      %627 = vmatpush.msra.mxu0 0.0
      %628 = vmatpush.msra.mxu0 0.0
      %629 = vmatpush.msra.mxu0 0.0
      %630 = vmatpush.msra.mxu0 0.0
      %631 = vmatpush.msra.mxu0 0.0
      %632 = vmatpush.msra.mxu0 0.0
      %633 = vmatpush.msra.mxu0 0.0
      %634 = vmatpush.msra.mxu0 0.0
      %635 = vmatpush.msra.mxu0 %v607
      %636 = vmatpush.msra.mxu0 %v606
      %637 = vmatpush.msra.mxu0 %v605
      %638 = vmatpush.msra.mxu0 %v604
      %639 = vmatmul.f32.gmra.mxu0 %v609
      %v640 = vpop.f32.mrf.mxu0
      %v641 = vadd.f32 0.0, %v640
      %642 = vmatmul.f32.gmra.mxu0 %v612
      %v643 = vpop.f32.mrf.mxu0
      %v644 = vadd.f32 0.0, %v643
      %645 = vmatmul.f32.gmra.mxu0 %v615
      %v646 = vpop.f32.mrf.mxu0
      %v647 = vadd.f32 0.0, %v646
      %648 = vmatmul.f32.gmra.mxu0 %v618
      %v649 = vpop.f32.mrf.mxu0
      %v650 = vadd.f32 0.0, %v649
      %651 = vmatmul.f32.gmra.mxu0 %v621
      %v652 = vpop.f32.mrf.mxu0
      %v653 = vadd.f32 0.0, %v652
      %654 = vdwg.mxu0
      %v655 = vadd.f32 %v593, %v641
      %v656 = vadd.f32 %v594, %v644
      %v657 = vadd.f32 %v595, %v647
      %v658 = vadd.f32 %v596, %v650
      %v659 = vadd.f32 %v597, %v653
      %v660 = vld [vmem:[%s535 + $0x2] sm:$0xff]
      %v661 = vld [vmem:[%s535 + $0x12] sm:$0xff]
      %v662 = vld [vmem:[%s535 + $0x22] sm:$0xff]
      %v663 = vld [vmem:[%s535 + $0x32] sm:$0xff]
      %v664 = vld [vmem:[%s535 + $0x42] sm:$0xff]
      %s665 = scalar_lea.vmem %s1, 256
      %v666 = vld [vmem:[%s665] sm:$0xff]
      %v667 = vld [vmem:[%s665 + $0x8] sm:$0xff]
      %v668 = vld [vmem:[%s665 + $0x10] sm:$0xff]
      %v669 = vld [vmem:[%s665 + $0x18] sm:$0xff]
      %v671 = vsel %vm191, %v660, 0
      %v674 = vsel %vm191, %v661, 0
      %v677 = vsel %vm191, %v662, 0
      %v680 = vsel %vm191, %v663, 0
      %v683 = vsel %vm191, %v664, 0
      %685 = vmatpush.msra.mxu0 0.0
      %686 = vmatpush.msra.mxu0 0.0
      %687 = vmatpush.msra.mxu0 0.0
      %688 = vmatpush.msra.mxu0 0.0
      %689 = vmatpush.msra.mxu0 0.0
      %690 = vmatpush.msra.mxu0 0.0
      %691 = vmatpush.msra.mxu0 0.0
      %692 = vmatpush.msra.mxu0 0.0
      %693 = vmatpush.msra.mxu0 0.0
      %694 = vmatpush.msra.mxu0 0.0
      %695 = vmatpush.msra.mxu0 0.0
      %696 = vmatpush.msra.mxu0 0.0
      %697 = vmatpush.msra.mxu0 %v669
      %698 = vmatpush.msra.mxu0 %v668
      %699 = vmatpush.msra.mxu0 %v667
      %700 = vmatpush.msra.mxu0 %v666
      %701 = vmatmul.f32.gmra.mxu0 %v671
      %v702 = vpop.f32.mrf.mxu0
      %v703 = vadd.f32 0.0, %v702
      %704 = vmatmul.f32.gmra.mxu0 %v674
      %v705 = vpop.f32.mrf.mxu0
      %v706 = vadd.f32 0.0, %v705
      %707 = vmatmul.f32.gmra.mxu0 %v677
      %v708 = vpop.f32.mrf.mxu0
      %v709 = vadd.f32 0.0, %v708
      %710 = vmatmul.f32.gmra.mxu0 %v680
      %v711 = vpop.f32.mrf.mxu0
      %v712 = vadd.f32 0.0, %v711
      %713 = vmatmul.f32.gmra.mxu0 %v683
      %v714 = vpop.f32.mrf.mxu0
      %v715 = vadd.f32 0.0, %v714
      %716 = vdwg.mxu0
      %v717 = vadd.f32 %v655, %v703
      %v718 = vadd.f32 %v656, %v706
      %v719 = vadd.f32 %v657, %v709
      %v720 = vadd.f32 %v658, %v712
      %v721 = vadd.f32 %v659, %v715
      %v722 = vld [vmem:[%s2] sm:$0x1]
      %v724 = vperm.slane %v722, 0
      %v726 = vadd.f32 %v717, %v724
      %v727 = vadd.f32 %v718, %v724
      %v728 = vadd.f32 %v719, %v724
      %v729 = vadd.f32 %v720, %v724
      %v730 = vadd.f32 %v721, %v724
      %v731 = vmax.f32 %v726, 0.0
      %v732 = vmax.f32 %v727, 0.0
      %v733 = vmax.f32 %v728, 0.0
      %v734 = vmax.f32 %v729, 0.0
      %v735 = vmax.f32 %v730, 0.0
      %vm736 = vcmask 523264
      %737 = vst.msk [vmem:[%s170] sm:$0xff] %vm736, %v731
      %738 = vst.msk [vmem:[%s170 + $0x8] sm:$0xff] %vm736, %v732
      %739 = vst.msk [vmem:[%s170 + $0x10] sm:$0xff] %vm736, %v733
      %740 = vst.msk [vmem:[%s170 + $0x18] sm:$0xff] %vm736, %v734
      %741 = vst.msk [vmem:[%s170 + $0x20] sm:$0xff] %vm736, %v735
      %s742 = smul.u32 5, %s14
      %p743 = scmp.lt.s32.totalorder %s742, 9
      %s744 = scalar_select %p743, %s742, 9
      %s745 = smul.addr %s744, 8
      %s746 = scalar_lea.vmem %s3, %s745
      // Predicated region
      $region33: #{cnn_forward.3} parent=31 // pred_check
        %p747 = pneg %p100
      $region34: #{cnn_forward.3} parent=31 // pred_check_branch
        %749 = sbr.rel (%p747) target = $region36
      $region35: #{cnn_forward.3} parent=31 // pred_region
        %s750 = smul.u32 5, %s14
      $region36: #{cnn_forward.3} parent=31 // pred_fallthru
        _
    $region32: #{cnn_forward.3} parent=5 // pred_fallthru
      _
    %p751 = scmp.le.s32.totalorder 2, %s9
    // Predicated region
    $region37: #{cnn_forward.3} parent=5 // pred_check
      %p752 = pneg %p751
    $region38: #{cnn_forward.3} parent=5 // pred_check_branch
      %754 = sbr.rel (%p752) target = $region40
    $region39: #{cnn_forward.3} parent=5 // pred_region
      %s755 = ssub.s32 %s9, 2
      // Predicated region
      $region41: #{cnn_forward.3} parent=39 // pred_check
        %p756 = pneg %p106
      $region42: #{cnn_forward.3} parent=39 // pred_check_branch
        %758 = sbr.rel (%p756) target = $region44
      $region43: #{cnn_forward.3} parent=39 // pred_region
        %s759 = smul.u32 5, %s15
        %p760 = scmp.lt.s32.totalorder %s759, 9
        %s761 = scalar_select %p760, %s759, 9
        %s762 = smul.addr %s761, 8
        %s763 = scalar_lea.vmem %s3, %s762
      $region44: #{cnn_forward.3} parent=39 // pred_fallthru
        _
    $region40: #{cnn_forward.3} parent=5 // pred_fallthru
      _
  $region6: #{cnn_forward.3} parent=0 // loop_footer
    %s13 = sadd.s32 1, %s9
  $region7: #{cnn_forward.3} parent=0 // loop_footer_branch
    %8 = sbr.rel target = $region3
  $region8: #{cnn_forward.3} parent=0 // loop_exit
    _

// kernel: cnn_forward.2
$region0: #{cnn_forward.2}
  #allocation0 [shape = 'u32[]', space=smem, size = 0x4, offset = 0x4, fixed_abs, tag = 'smem constant byte address 0x4 - core index']
  #allocation1 [shape = 'u32[72,128]{1,0:T(1,128)}', space=vmem, size = 0x9000, scoped, tag = 'internal scratch']
  %s0 = inlined_call_operand.vmem [shape: f32[2,32,9,4], index: 0, kind: input, shape index: {}]
  %s1 = inlined_call_operand.vmem [shape: f32[16,4,32], index: 1, kind: input, shape index: {}]
  %s2 = inlined_call_operand.vmem [shape: f32[1,32], index: 2, kind: input, shape index: {}]
  %s3 = inlined_call_operand.vmem [shape: f32[112,32], index: 3, kind: output, shape index: {}]
  %s4 = sld [smem:[#allocation0]]
  $region45: #{cnn_forward.2} parent=0
    _
  %s6 = ssub.s32 1, %s4
  %s7 = scalar_select 0, %s6, %s4
  loop: start=0, step=1, limit=4
  $region2: #{cnn_forward.2} parent=0 // loop_pre_header
    _
  $region3: #{cnn_forward.2} parent=0 // loop_header
    %s9 = sphi 0, %s13
    %p10 = scmp.ge.s32.totalorder %s9, 4
    %s19 = sphi 0, %s21
    %s22 = sphi 0, %s19
    %s23 = sphi 0, %s22
    %s39 = sphi 0, %s23
    %s43 = sphi 0, %s43
    %s45 = sphi 0, %s43
    %s46 = sphi 0, %s45
    %s60 = sphi 0, %s46
    %s64 = sphi 0, %s64
    %s66 = sphi 0, %s64
    %s67 = sphi 0, %s66
    %s81 = sphi 0, %s67
    %s87 = sphi 0, %s89
    %s90 = sphi 0, %s87
    %s91 = sphi 0, %s90
    %s107 = sphi 0, %s91
  $region4: #{cnn_forward.2} parent=0 // loop_header_branch
    %12 = sbr.rel (%p10) target = $region8
  $region5: #{cnn_forward.2} parent=0 // loop_body
    %s14 = ssub.s32 %s9, 1
    %s15 = ssub.s32 %s9, 2
    %s16 = sadd.s32 %s9, 1
    %s17 = ssub.s32 %s9, %s16
    %p18 = scmp.eq.s32.totalorder %s17, 0
    %s20 = sadd.s32 %s19, 1
    %s21 = scalar_select %p18, %s19, %s20
    %p24 = pneg %p18
    %p25 = scmp.eq.s32.totalorder %s9, 1
    %p26 = por %p24, %p25
    %p27 = scmp.ne.s32.totalorder %s19, %s22
    %p28 = scmp.eq.s32.totalorder %s9, 0
    %p29 = por %p27, %p28
    %p30 = scmp.ne.s32.totalorder %s19, %s22
    %p31 = scmp.eq.s32.totalorder %s14, 1
    %p32 = por %p30, %p31
    %p33 = scmp.ne.s32.totalorder %s22, %s23
    %p34 = scmp.eq.s32.totalorder %s14, 0
    %p35 = por %p33, %p34
    %p36 = scmp.ne.s32.totalorder %s22, %s23
    %p37 = scmp.eq.s32.totalorder %s15, 1
    %p38 = por %p36, %p37
    %p40 = scmp.ne.s32.totalorder %s23, %s39
    %p41 = scmp.eq.s32.totalorder %s15, 0
    %p42 = por %p40, %p41
    %s44 = sadd.s32 %s43, 1
    %p47 = scmp.eq.s32.totalorder %s9, 1
    %p48 = scmp.ne.s32.totalorder %s43, %s45
    %p49 = scmp.eq.s32.totalorder %s9, 0
    %p50 = por %p48, %p49
    %p51 = scmp.ne.s32.totalorder %s43, %s45
    %p52 = scmp.eq.s32.totalorder %s14, 1
    %p53 = por %p51, %p52
    %p54 = scmp.ne.s32.totalorder %s45, %s46
    %p55 = scmp.eq.s32.totalorder %s14, 0
    %p56 = por %p54, %p55
    %p57 = scmp.ne.s32.totalorder %s45, %s46
    %p58 = scmp.eq.s32.totalorder %s15, 1
    %p59 = por %p57, %p58
    %p61 = scmp.ne.s32.totalorder %s46, %s60
    %p62 = scmp.eq.s32.totalorder %s15, 0
    %p63 = por %p61, %p62
    %s65 = sadd.s32 %s64, 1
    %p68 = scmp.eq.s32.totalorder %s9, 1
    %p69 = scmp.ne.s32.totalorder %s64, %s66
    %p70 = scmp.eq.s32.totalorder %s9, 0
    %p71 = por %p69, %p70
    %p72 = scmp.ne.s32.totalorder %s64, %s66
    %p73 = scmp.eq.s32.totalorder %s14, 1
    %p74 = por %p72, %p73
    %p75 = scmp.ne.s32.totalorder %s66, %s67
    %p76 = scmp.eq.s32.totalorder %s14, 0
    %p77 = por %p75, %p76
    %p78 = scmp.ne.s32.totalorder %s66, %s67
    %p79 = scmp.eq.s32.totalorder %s15, 1
    %p80 = por %p78, %p79
    %p82 = scmp.ne.s32.totalorder %s67, %s81
    %p83 = scmp.eq.s32.totalorder %s15, 0
    %p84 = por %p82, %p83
    %s85 = ssub.s32 %s9, %s16
    %p86 = scmp.eq.s32.totalorder %s85, 0
    %s88 = sadd.s32 %s87, 1
    %s89 = scalar_select %p86, %s87, %s88
    %p92 = pneg %p86
    %p93 = scmp.eq.s32.totalorder %s9, 1
    %p94 = por %p92, %p93
    %p95 = scmp.ne.s32.totalorder %s87, %s90
    %p96 = scmp.eq.s32.totalorder %s9, 0
    %p97 = por %p95, %p96
    %p98 = scmp.ne.s32.totalorder %s87, %s90
    %p99 = scmp.eq.s32.totalorder %s14, 1
    %p100 = por %p98, %p99
    %p101 = scmp.ne.s32.totalorder %s90, %s91
    %p102 = scmp.eq.s32.totalorder %s14, 0
    %p103 = por %p101, %p102
    %p104 = scmp.ne.s32.totalorder %s90, %s91
    %p105 = scmp.eq.s32.totalorder %s15, 1
    %p106 = por %p104, %p105
    %p108 = scmp.ne.s32.totalorder %s91, %s107
    %p109 = scmp.eq.s32.totalorder %s15, 0
    %p110 = por %p108, %p109
    %p111 = scmp.le.s32.totalorder 1, %s9
    %p112 = scmp.lt.s32.totalorder %s9, 3
    %p113 = pnand %p111, %p112
    %p114 = pneg %p113
    // Predicated region
    $region9: #{cnn_forward.2} parent=5 // pred_check
      _
    $region10: #{cnn_forward.2} parent=5 // pred_check_branch
      %116 = sbr.rel (%p113) target = $region12
    $region11: #{cnn_forward.2} parent=5 // pred_region
      %s117 = ssub.s32 %s9, 1
      // Predicated region
      $region13: #{cnn_forward.2} parent=11 // pred_check
        %p118 = pneg %p56
      $region14: #{cnn_forward.2} parent=11 // pred_check_branch
        %120 = sbr.rel (%p118) target = $region16
      $region15: #{cnn_forward.2} parent=11 // pred_region
        _
      $region16: #{cnn_forward.2} parent=11 // pred_fallthru
        _
      // Predicated region
      $region17: #{cnn_forward.2} parent=11 // pred_check
        %p121 = pneg %p77
      $region18: #{cnn_forward.2} parent=11 // pred_check_branch
        %123 = sbr.rel (%p121) target = $region20
      $region19: #{cnn_forward.2} parent=11 // pred_region
        _
      $region20: #{cnn_forward.2} parent=11 // pred_fallthru
        _
    $region12: #{cnn_forward.2} parent=5 // pred_fallthru
      _
    %p124 = scmp.lt.s32.totalorder %s9, 2
    // Predicated region
    $region21: #{cnn_forward.2} parent=5 // pred_check
      %p125 = pneg %p124
    $region22: #{cnn_forward.2} parent=5 // pred_check_branch
      %127 = sbr.rel (%p125) target = $region24
    $region23: #{cnn_forward.2} parent=5 // pred_region
      // Predicated region
      $region25: #{cnn_forward.2} parent=23 // pred_check
        %p128 = pneg %p29
      $region26: #{cnn_forward.2} parent=23 // pred_check_branch
        %130 = sbr.rel (%p128) target = $region28
      $region27: #{cnn_forward.2} parent=23 // pred_region
        %p131 = scmp.lt.s32.totalorder %s9, 1
        %s132 = scalar_select %p131, %s9, 1
        %s133 = smul.addr %s132, 64
        %s134 = smul.addr %s133, 8
        %s135 = scalar_lea.vmem %s0, %s134
      $region28: #{cnn_forward.2} parent=23 // pred_fallthru
        _
    $region24: #{cnn_forward.2} parent=5 // pred_fallthru
      _
    %p136 = scmp.le.s32.totalorder 1, %s9
    %p137 = scmp.lt.s32.totalorder %s9, 3
    %p138 = pnand %p136, %p137
    %p139 = pneg %p138
    // Predicated region
    $region29: #{cnn_forward.2} parent=5 // pred_check
      _
    $region30: #{cnn_forward.2} parent=5 // pred_check_branch
      %141 = sbr.rel (%p138) target = $region32
    $region31: #{cnn_forward.2} parent=5 // pred_region
      %s142 = ssub.s32 %s9, 1
      %p143 = scmp.lt.s32.totalorder %s14, 1
      %s144 = scalar_select %p143, %s14, 1
      %s145 = smul.addr %s144, 64
      %s146 = smul.addr %s145, 8
      %s147 = scalar_lea.vmem %s0, %s146
      %p148 = pneg %p35
      %p149 = pneg %p32
      %p150 = pneg %p56
      %p151 = pneg %p53
      %p152 = pneg %p77
      %p153 = pneg %p74
      %p154 = pneg %p103
      %p155 = pneg %p100
      %s156 = smul.u32 7, %s14
      %p157 = scmp.lt.s32.totalorder %s156, 13
      %s158 = scalar_select %p157, %s156, 13
      %s159 = smul.addr %s158, 8
      %s160 = scalar_lea.vmem %s3, %s159
      %p161 = scmp.lt.s32.totalorder %s14, 1
      %s162 = scalar_select %p161, %s14, 1
      %s163 = smul.addr %s162, 64
      %s164 = smul.addr %s163, 8
      %s165 = scalar_lea.vmem %s0, %s164
      %s166 = smul.u32 7, %s14
      %p167 = scmp.lt.s32.totalorder %s166, 13
      %s168 = scalar_select %p167, %s166, 13
      %s169 = smul.addr %s168, 8
      %s170 = scalar_lea.vmem %s3, %s169
      %s171 = smul.u32 7, %s14
      %v172 = vld [vmem:[%s165] sm:$0xff]
      %v173 = vld [vmem:[%s165 + $0x10] sm:$0xff]
      %v174 = vld [vmem:[%s165 + $0x20] sm:$0xff]
      %v175 = vld [vmem:[%s165 + $0x30] sm:$0xff]
      %v176 = vld [vmem:[%s165 + $0x40] sm:$0xff]
      %v177 = vld [vmem:[%s165 + $0x50] sm:$0xff]
      %v178 = vld [vmem:[%s165 + $0x60] sm:$0xff]
      %v179 = vld [vmem:[%s1] sm:$0xf]
      %s180 = scalar_lea.vmem %s165, 128
      %v181 = vld [vmem:[%s180] sm:$0xff]
      %v182 = vld [vmem:[%s180 + $0x10] sm:$0xff]
      %v183 = vld [vmem:[%s180 + $0x20] sm:$0xff]
      %v184 = vld [vmem:[%s180 + $0x30] sm:$0xff]
      %v185 = vld [vmem:[%s180 + $0x40] sm:$0xff]
      %v186 = vld [vmem:[%s180 + $0x50] sm:$0xff]
      %v187 = vld [vmem:[%s180 + $0x60] sm:$0xff]
      %s188 = scalar_lea.vmem %s1, 4
      %v189 = vld [vmem:[%s188] sm:$0xf]
      %vm190 = vcmask 31744
      %v192 = vsel %vm190, %v181, 0
      %v195 = vsel %vm190, %v182, 0
      %v198 = vsel %vm190, %v183, 0
      %v201 = vsel %vm190, %v184, 0
      %v204 = vsel %vm190, %v185, 0
      %v207 = vsel %vm190, %v186, 0
      %v210 = vsel %vm190, %v187, 0
      %vm212 = vcmask 1043456
      %v214 = vsel %vm212, %v189, 0
      %216 = vmatpush.msra.mxu0 0.0
      %217 = vmatpush.msra.mxu0 0.0
      %218 = vmatpush.msra.mxu0 0.0
      %219 = vmatpush.msra.mxu0 0.0
      %220 = vmatpush.msra.mxu0 0.0
      %221 = vmatpush.msra.mxu0 0.0
      %222 = vmatpush.msra.mxu0 0.0
      %223 = vmatpush.msra.mxu0 0.0
      %224 = vmatpush.msra.mxu0 0.0
      %225 = vmatpush.msra.mxu0 0.0
      %226 = vmatpush.msra.mxu0 0.0
      %227 = vmatpush.msra.mxu0 0.0
      %228 = vmatpush.msra.mxu0 0.0
      %229 = vmatpush.msra.mxu0 0.0
      %230 = vmatpush.msra.mxu0 0.0
      %231 = vmatpush.msra.mxu0 %v214
      %232 = vmatmul.f32.gmra.mxu0 %v192
      %v233 = vpop.f32.mrf.mxu0
      %v234 = vadd.f32 0.0, %v233
      %235 = vmatmul.f32.gmra.mxu0 %v195
      %v236 = vpop.f32.mrf.mxu0
      %v237 = vadd.f32 0.0, %v236
      %238 = vmatmul.f32.gmra.mxu0 %v198
      %v239 = vpop.f32.mrf.mxu0
      %v240 = vadd.f32 0.0, %v239
      %241 = vmatmul.f32.gmra.mxu0 %v201
      %v242 = vpop.f32.mrf.mxu0
      %v243 = vadd.f32 0.0, %v242
      %244 = vmatmul.f32.gmra.mxu0 %v204
      %v245 = vpop.f32.mrf.mxu0
      %v246 = vadd.f32 0.0, %v245
      %247 = vmatmul.f32.gmra.mxu0 %v207
      %v248 = vpop.f32.mrf.mxu0
      %v249 = vadd.f32 0.0, %v248
      %250 = vmatmul.f32.gmra.mxu0 %v210
      %v251 = vpop.f32.mrf.mxu0
      %v252 = vadd.f32 0.0, %v251
      %253 = vdwg.mxu0
      %v255 = vsel %vm190, %v172, 0
      %v258 = vsel %vm190, %v173, 0
      %v261 = vsel %vm190, %v174, 0
      %v264 = vsel %vm190, %v175, 0
      %v267 = vsel %vm190, %v176, 0
      %v270 = vsel %vm190, %v177, 0
      %v273 = vsel %vm190, %v178, 0
      %v276 = vsel %vm212, %v179, 0
      %278 = vmatpush.msra.mxu0 0.0
      %279 = vmatpush.msra.mxu0 0.0
      %280 = vmatpush.msra.mxu0 0.0
      %281 = vmatpush.msra.mxu0 0.0
      %282 = vmatpush.msra.mxu0 0.0
      %283 = vmatpush.msra.mxu0 0.0
      %284 = vmatpush.msra.mxu0 0.0
      %285 = vmatpush.msra.mxu0 0.0
      %286 = vmatpush.msra.mxu0 0.0
      %287 = vmatpush.msra.mxu0 0.0
      %288 = vmatpush.msra.mxu0 0.0
      %289 = vmatpush.msra.mxu0 0.0
      %290 = vmatpush.msra.mxu0 0.0
      %291 = vmatpush.msra.mxu0 0.0
      %292 = vmatpush.msra.mxu0 0.0
      %293 = vmatpush.msra.mxu0 %v276
      %294 = vmatmul.f32.gmra.mxu0 %v255
      %v295 = vpop.f32.mrf.mxu0
      %v296 = vadd.f32 %v234, %v295
      %297 = vmatmul.f32.gmra.mxu0 %v258
      %v298 = vpop.f32.mrf.mxu0
      %v299 = vadd.f32 %v237, %v298
      %300 = vmatmul.f32.gmra.mxu0 %v261
      %v301 = vpop.f32.mrf.mxu0
      %v302 = vadd.f32 %v240, %v301
      %303 = vmatmul.f32.gmra.mxu0 %v264
      %v304 = vpop.f32.mrf.mxu0
      %v305 = vadd.f32 %v243, %v304
      %306 = vmatmul.f32.gmra.mxu0 %v267
      %v307 = vpop.f32.mrf.mxu0
      %v308 = vadd.f32 %v246, %v307
      %309 = vmatmul.f32.gmra.mxu0 %v270
      %v310 = vpop.f32.mrf.mxu0
      %v311 = vadd.f32 %v249, %v310
      %312 = vmatmul.f32.gmra.mxu0 %v273
      %v313 = vpop.f32.mrf.mxu0
      %v314 = vadd.f32 %v252, %v313
      %315 = vdwg.mxu0
      %v316 = vld [vmem:[%s165 + $0x1] sm:$0xff]
      %v317 = vld [vmem:[%s165 + $0x11] sm:$0xff]
      %v318 = vld [vmem:[%s165 + $0x21] sm:$0xff]
      %v319 = vld [vmem:[%s165 + $0x31] sm:$0xff]
      %v320 = vld [vmem:[%s165 + $0x41] sm:$0xff]
      %v321 = vld [vmem:[%s165 + $0x51] sm:$0xff]
      %v322 = vld [vmem:[%s165 + $0x61] sm:$0xff]
      %s323 = scalar_lea.vmem %s1, 8
      %v324 = vld [vmem:[%s323] sm:$0xf]
      %v326 = vsel %vm190, %v316, 0
      %v329 = vsel %vm190, %v317, 0
      %v332 = vsel %vm190, %v318, 0
      %v335 = vsel %vm190, %v319, 0
      %v338 = vsel %vm190, %v320, 0
      %v341 = vsel %vm190, %v321, 0
      %v344 = vsel %vm190, %v322, 0
      %v347 = vsel %vm212, %v324, 0
      %349 = vmatpush.msra.mxu0 0.0
      %350 = vmatpush.msra.mxu0 0.0
      %351 = vmatpush.msra.mxu0 0.0
      %352 = vmatpush.msra.mxu0 0.0
      %353 = vmatpush.msra.mxu0 0.0
      %354 = vmatpush.msra.mxu0 0.0
      %355 = vmatpush.msra.mxu0 0.0
      %356 = vmatpush.msra.mxu0 0.0
      %357 = vmatpush.msra.mxu0 0.0
      %358 = vmatpush.msra.mxu0 0.0
      %359 = vmatpush.msra.mxu0 0.0
      %360 = vmatpush.msra.mxu0 0.0
      %361 = vmatpush.msra.mxu0 0.0
      %362 = vmatpush.msra.mxu0 0.0
      %363 = vmatpush.msra.mxu0 0.0
      %364 = vmatpush.msra.mxu0 %v347
      %365 = vmatmul.f32.gmra.mxu0 %v326
      %v366 = vpop.f32.mrf.mxu0
      %v367 = vadd.f32 0.0, %v366
      %368 = vmatmul.f32.gmra.mxu0 %v329
      %v369 = vpop.f32.mrf.mxu0
      %v370 = vadd.f32 0.0, %v369
      %371 = vmatmul.f32.gmra.mxu0 %v332
      %v372 = vpop.f32.mrf.mxu0
      %v373 = vadd.f32 0.0, %v372
      %374 = vmatmul.f32.gmra.mxu0 %v335
      %v375 = vpop.f32.mrf.mxu0
      %v376 = vadd.f32 0.0, %v375
      %377 = vmatmul.f32.gmra.mxu0 %v338
      %v378 = vpop.f32.mrf.mxu0
      %v379 = vadd.f32 0.0, %v378
      %380 = vmatmul.f32.gmra.mxu0 %v341
      %v381 = vpop.f32.mrf.mxu0
      %v382 = vadd.f32 0.0, %v381
      %383 = vmatmul.f32.gmra.mxu0 %v344
      %v384 = vpop.f32.mrf.mxu0
      %v385 = vadd.f32 0.0, %v384
      %386 = vdwg.mxu0
      %v387 = vadd.f32 %v296, %v367
      %v388 = vadd.f32 %v299, %v370
      %v389 = vadd.f32 %v302, %v373
      %v390 = vadd.f32 %v305, %v376
      %v391 = vadd.f32 %v308, %v379
      %v392 = vadd.f32 %v311, %v382
      %v393 = vadd.f32 %v314, %v385
      %v394 = vld [vmem:[%s180 + $0x1] sm:$0xff]
      %v395 = vld [vmem:[%s180 + $0x11] sm:$0xff]
      %v396 = vld [vmem:[%s180 + $0x21] sm:$0xff]
      %v397 = vld [vmem:[%s180 + $0x31] sm:$0xff]
      %v398 = vld [vmem:[%s180 + $0x41] sm:$0xff]
      %v399 = vld [vmem:[%s180 + $0x51] sm:$0xff]
      %v400 = vld [vmem:[%s180 + $0x61] sm:$0xff]
      %s401 = scalar_lea.vmem %s1, 12
      %v402 = vld [vmem:[%s401] sm:$0xf]
      %v404 = vsel %vm190, %v394, 0
      %v407 = vsel %vm190, %v395, 0
      %v410 = vsel %vm190, %v396, 0
      %v413 = vsel %vm190, %v397, 0
      %v416 = vsel %vm190, %v398, 0
      %v419 = vsel %vm190, %v399, 0
      %v422 = vsel %vm190, %v400, 0
      %v425 = vsel %vm212, %v402, 0
      %427 = vmatpush.msra.mxu0 0.0
      %428 = vmatpush.msra.mxu0 0.0
      %429 = vmatpush.msra.mxu0 0.0
      %430 = vmatpush.msra.mxu0 0.0
      %431 = vmatpush.msra.mxu0 0.0
      %432 = vmatpush.msra.mxu0 0.0
      %433 = vmatpush.msra.mxu0 0.0
      %434 = vmatpush.msra.mxu0 0.0
      %435 = vmatpush.msra.mxu0 0.0
      %436 = vmatpush.msra.mxu0 0.0
      %437 = vmatpush.msra.mxu0 0.0
      %438 = vmatpush.msra.mxu0 0.0
      %439 = vmatpush.msra.mxu0 0.0
      %440 = vmatpush.msra.mxu0 0.0
      %441 = vmatpush.msra.mxu0 0.0
      %442 = vmatpush.msra.mxu0 %v425
      %443 = vmatmul.f32.gmra.mxu0 %v404
      %v444 = vpop.f32.mrf.mxu0
      %v445 = vadd.f32 0.0, %v444
      %446 = vmatmul.f32.gmra.mxu0 %v407
      %v447 = vpop.f32.mrf.mxu0
      %v448 = vadd.f32 0.0, %v447
      %449 = vmatmul.f32.gmra.mxu0 %v410
      %v450 = vpop.f32.mrf.mxu0
      %v451 = vadd.f32 0.0, %v450
      %452 = vmatmul.f32.gmra.mxu0 %v413
      %v453 = vpop.f32.mrf.mxu0
      %v454 = vadd.f32 0.0, %v453
      %455 = vmatmul.f32.gmra.mxu0 %v416
      %v456 = vpop.f32.mrf.mxu0
      %v457 = vadd.f32 0.0, %v456
      %458 = vmatmul.f32.gmra.mxu0 %v419
      %v459 = vpop.f32.mrf.mxu0
      %v460 = vadd.f32 0.0, %v459
      %461 = vmatmul.f32.gmra.mxu0 %v422
      %v462 = vpop.f32.mrf.mxu0
      %v463 = vadd.f32 0.0, %v462
      %464 = vdwg.mxu0
      %v465 = vadd.f32 %v387, %v445
      %v466 = vadd.f32 %v388, %v448
      %v467 = vadd.f32 %v389, %v451
      %v468 = vadd.f32 %v390, %v454
      %v469 = vadd.f32 %v391, %v457
      %v470 = vadd.f32 %v392, %v460
      %v471 = vadd.f32 %v393, %v463
      %s472 = scalar_lea.vmem %s165, 256
      %v473 = vld [vmem:[%s472] sm:$0xff]
      %v474 = vld [vmem:[%s472 + $0x10] sm:$0xff]
      %v475 = vld [vmem:[%s472 + $0x20] sm:$0xff]
      %v476 = vld [vmem:[%s472 + $0x30] sm:$0xff]
      %v477 = vld [vmem:[%s472 + $0x40] sm:$0xff]
      %v478 = vld [vmem:[%s472 + $0x50] sm:$0xff]
      %v479 = vld [vmem:[%s472 + $0x60] sm:$0xff]
      %s480 = scalar_lea.vmem %s1, 16
      %v481 = vld [vmem:[%s480] sm:$0xf]
      %v483 = vsel %vm190, %v473, 0
      %v486 = vsel %vm190, %v474, 0
      %v489 = vsel %vm190, %v475, 0
      %v492 = vsel %vm190, %v476, 0
      %v495 = vsel %vm190, %v477, 0
      %v498 = vsel %vm190, %v478, 0
      %v501 = vsel %vm190, %v479, 0
      %v504 = vsel %vm212, %v481, 0
      %506 = vmatpush.msra.mxu0 0.0
      %507 = vmatpush.msra.mxu0 0.0
      %508 = vmatpush.msra.mxu0 0.0
      %509 = vmatpush.msra.mxu0 0.0
      %510 = vmatpush.msra.mxu0 0.0
      %511 = vmatpush.msra.mxu0 0.0
      %512 = vmatpush.msra.mxu0 0.0
      %513 = vmatpush.msra.mxu0 0.0
      %514 = vmatpush.msra.mxu0 0.0
      %515 = vmatpush.msra.mxu0 0.0
      %516 = vmatpush.msra.mxu0 0.0
      %517 = vmatpush.msra.mxu0 0.0
      %518 = vmatpush.msra.mxu0 0.0
      %519 = vmatpush.msra.mxu0 0.0
      %520 = vmatpush.msra.mxu0 0.0
      %521 = vmatpush.msra.mxu0 %v504
      %522 = vmatmul.f32.gmra.mxu0 %v483
      %v523 = vpop.f32.mrf.mxu0
      %v524 = vadd.f32 0.0, %v523
      %525 = vmatmul.f32.gmra.mxu0 %v486
      %v526 = vpop.f32.mrf.mxu0
      %v527 = vadd.f32 0.0, %v526
      %528 = vmatmul.f32.gmra.mxu0 %v489
      %v529 = vpop.f32.mrf.mxu0
      %v530 = vadd.f32 0.0, %v529
      %531 = vmatmul.f32.gmra.mxu0 %v492
      %v532 = vpop.f32.mrf.mxu0
      %v533 = vadd.f32 0.0, %v532
      %534 = vmatmul.f32.gmra.mxu0 %v495
      %v535 = vpop.f32.mrf.mxu0
      %v536 = vadd.f32 0.0, %v535
      %537 = vmatmul.f32.gmra.mxu0 %v498
      %v538 = vpop.f32.mrf.mxu0
      %v539 = vadd.f32 0.0, %v538
      %540 = vmatmul.f32.gmra.mxu0 %v501
      %v541 = vpop.f32.mrf.mxu0
      %v542 = vadd.f32 0.0, %v541
      %543 = vdwg.mxu0
      %v544 = vadd.f32 %v465, %v524
      %v545 = vadd.f32 %v466, %v527
      %v546 = vadd.f32 %v467, %v530
      %v547 = vadd.f32 %v468, %v533
      %v548 = vadd.f32 %v469, %v536
      %v549 = vadd.f32 %v470, %v539
      %v550 = vadd.f32 %v471, %v542
      %s551 = scalar_lea.vmem %s165, 384
      %v552 = vld [vmem:[%s551] sm:$0xff]
      %v553 = vld [vmem:[%s551 + $0x10] sm:$0xff]
      %v554 = vld [vmem:[%s551 + $0x20] sm:$0xff]
      %v555 = vld [vmem:[%s551 + $0x30] sm:$0xff]
      %v556 = vld [vmem:[%s551 + $0x40] sm:$0xff]
      %v557 = vld [vmem:[%s551 + $0x50] sm:$0xff]
      %v558 = vld [vmem:[%s551 + $0x60] sm:$0xff]
      %s559 = scalar_lea.vmem %s1, 20
      %v560 = vld [vmem:[%s559] sm:$0xf]
      %v562 = vsel %vm190, %v552, 0
      %v565 = vsel %vm190, %v553, 0
      %v568 = vsel %vm190, %v554, 0
      %v571 = vsel %vm190, %v555, 0
      %v574 = vsel %vm190, %v556, 0
      %v577 = vsel %vm190, %v557, 0
      %v580 = vsel %vm190, %v558, 0
      %v583 = vsel %vm212, %v560, 0
      %585 = vmatpush.msra.mxu0 0.0
      %586 = vmatpush.msra.mxu0 0.0
      %587 = vmatpush.msra.mxu0 0.0
      %588 = vmatpush.msra.mxu0 0.0
      %589 = vmatpush.msra.mxu0 0.0
      %590 = vmatpush.msra.mxu0 0.0
      %591 = vmatpush.msra.mxu0 0.0
      %592 = vmatpush.msra.mxu0 0.0
      %593 = vmatpush.msra.mxu0 0.0
      %594 = vmatpush.msra.mxu0 0.0
      %595 = vmatpush.msra.mxu0 0.0
      %596 = vmatpush.msra.mxu0 0.0
      %597 = vmatpush.msra.mxu0 0.0
      %598 = vmatpush.msra.mxu0 0.0
      %599 = vmatpush.msra.mxu0 0.0
      %600 = vmatpush.msra.mxu0 %v583
      %601 = vmatmul.f32.gmra.mxu0 %v562
      %v602 = vpop.f32.mrf.mxu0
      %v603 = vadd.f32 0.0, %v602
      %604 = vmatmul.f32.gmra.mxu0 %v565
      %v605 = vpop.f32.mrf.mxu0
      %v606 = vadd.f32 0.0, %v605
      %607 = vmatmul.f32.gmra.mxu0 %v568
      %v608 = vpop.f32.mrf.mxu0
      %v609 = vadd.f32 0.0, %v608
      %610 = vmatmul.f32.gmra.mxu0 %v571
      %v611 = vpop.f32.mrf.mxu0
      %v612 = vadd.f32 0.0, %v611
      %613 = vmatmul.f32.gmra.mxu0 %v574
      %v614 = vpop.f32.mrf.mxu0
      %v615 = vadd.f32 0.0, %v614
      %616 = vmatmul.f32.gmra.mxu0 %v577
      %v617 = vpop.f32.mrf.mxu0
      %v618 = vadd.f32 0.0, %v617
      %619 = vmatmul.f32.gmra.mxu0 %v580
      %v620 = vpop.f32.mrf.mxu0
      %v621 = vadd.f32 0.0, %v620
      %622 = vdwg.mxu0
      %v623 = vadd.f32 %v544, %v603
      %v624 = vadd.f32 %v545, %v606
      %v625 = vadd.f32 %v546, %v609
      %v626 = vadd.f32 %v547, %v612
      %v627 = vadd.f32 %v548, %v615
      %v628 = vadd.f32 %v549, %v618
      %v629 = vadd.f32 %v550, %v621
      %v630 = vld [vmem:[%s472 + $0x1] sm:$0xff]
      %v631 = vld [vmem:[%s472 + $0x11] sm:$0xff]
      %v632 = vld [vmem:[%s472 + $0x21] sm:$0xff]
      %v633 = vld [vmem:[%s472 + $0x31] sm:$0xff]
      %v634 = vld [vmem:[%s472 + $0x41] sm:$0xff]
      %v635 = vld [vmem:[%s472 + $0x51] sm:$0xff]
      %v636 = vld [vmem:[%s472 + $0x61] sm:$0xff]
      %s637 = scalar_lea.vmem %s1, 24
      %v638 = vld [vmem:[%s637] sm:$0xf]
      %v640 = vsel %vm190, %v630, 0
      %v643 = vsel %vm190, %v631, 0
      %v646 = vsel %vm190, %v632, 0
      %v649 = vsel %vm190, %v633, 0
      %v652 = vsel %vm190, %v634, 0
      %v655 = vsel %vm190, %v635, 0
      %v658 = vsel %vm190, %v636, 0
      %v661 = vsel %vm212, %v638, 0
      %663 = vmatpush.msra.mxu0 0.0
      %664 = vmatpush.msra.mxu0 0.0
      %665 = vmatpush.msra.mxu0 0.0
      %666 = vmatpush.msra.mxu0 0.0
      %667 = vmatpush.msra.mxu0 0.0
      %668 = vmatpush.msra.mxu0 0.0
      %669 = vmatpush.msra.mxu0 0.0
      %670 = vmatpush.msra.mxu0 0.0
      %671 = vmatpush.msra.mxu0 0.0
      %672 = vmatpush.msra.mxu0 0.0
      %673 = vmatpush.msra.mxu0 0.0
      %674 = vmatpush.msra.mxu0 0.0
      %675 = vmatpush.msra.mxu0 0.0
      %676 = vmatpush.msra.mxu0 0.0
      %677 = vmatpush.msra.mxu0 0.0
      %678 = vmatpush.msra.mxu0 %v661
      %679 = vmatmul.f32.gmra.mxu0 %v640
      %v680 = vpop.f32.mrf.mxu0
      %v681 = vadd.f32 0.0, %v680
      %682 = vmatmul.f32.gmra.mxu0 %v643
      %v683 = vpop.f32.mrf.mxu0
      %v684 = vadd.f32 0.0, %v683
      %685 = vmatmul.f32.gmra.mxu0 %v646
      %v686 = vpop.f32.mrf.mxu0
      %v687 = vadd.f32 0.0, %v686
      %688 = vmatmul.f32.gmra.mxu0 %v649
      %v689 = vpop.f32.mrf.mxu0
      %v690 = vadd.f32 0.0, %v689
      %691 = vmatmul.f32.gmra.mxu0 %v652
      %v692 = vpop.f32.mrf.mxu0
      %v693 = vadd.f32 0.0, %v692
      %694 = vmatmul.f32.gmra.mxu0 %v655
      %v695 = vpop.f32.mrf.mxu0
      %v696 = vadd.f32 0.0, %v695
      %697 = vmatmul.f32.gmra.mxu0 %v658
      %v698 = vpop.f32.mrf.mxu0
      %v699 = vadd.f32 0.0, %v698
      %700 = vdwg.mxu0
      %v701 = vadd.f32 %v623, %v681
      %v702 = vadd.f32 %v624, %v684
      %v703 = vadd.f32 %v625, %v687
      %v704 = vadd.f32 %v626, %v690
      %v705 = vadd.f32 %v627, %v693
      %v706 = vadd.f32 %v628, %v696
      %v707 = vadd.f32 %v629, %v699
      %v708 = vld [vmem:[%s551 + $0x1] sm:$0xff]
      %v709 = vld [vmem:[%s551 + $0x11] sm:$0xff]
      %v710 = vld [vmem:[%s551 + $0x21] sm:$0xff]
      %v711 = vld [vmem:[%s551 + $0x31] sm:$0xff]
      %v712 = vld [vmem:[%s551 + $0x41] sm:$0xff]
      %v713 = vld [vmem:[%s551 + $0x51] sm:$0xff]
      %v714 = vld [vmem:[%s551 + $0x61] sm:$0xff]
      %s715 = scalar_lea.vmem %s1, 28
      %v716 = vld [vmem:[%s715] sm:$0xf]
      %v718 = vsel %vm190, %v708, 0
      %v721 = vsel %vm190, %v709, 0
      %v724 = vsel %vm190, %v710, 0
      %v727 = vsel %vm190, %v711, 0
      %v730 = vsel %vm190, %v712, 0
      %v733 = vsel %vm190, %v713, 0
      %v736 = vsel %vm190, %v714, 0
      %v739 = vsel %vm212, %v716, 0
      %741 = vmatpush.msra.mxu0 0.0
      %742 = vmatpush.msra.mxu0 0.0
      %743 = vmatpush.msra.mxu0 0.0
      %744 = vmatpush.msra.mxu0 0.0
      %745 = vmatpush.msra.mxu0 0.0
      %746 = vmatpush.msra.mxu0 0.0
      %747 = vmatpush.msra.mxu0 0.0
      %748 = vmatpush.msra.mxu0 0.0
      %749 = vmatpush.msra.mxu0 0.0
      %750 = vmatpush.msra.mxu0 0.0
      %751 = vmatpush.msra.mxu0 0.0
      %752 = vmatpush.msra.mxu0 0.0
      %753 = vmatpush.msra.mxu0 0.0
      %754 = vmatpush.msra.mxu0 0.0
      %755 = vmatpush.msra.mxu0 0.0
      %756 = vmatpush.msra.mxu0 %v739
      %757 = vmatmul.f32.gmra.mxu0 %v718
      %v758 = vpop.f32.mrf.mxu0
      %v759 = vadd.f32 0.0, %v758
      %760 = vmatmul.f32.gmra.mxu0 %v721
      %v761 = vpop.f32.mrf.mxu0
      %v762 = vadd.f32 0.0, %v761
      %763 = vmatmul.f32.gmra.mxu0 %v724
      %v764 = vpop.f32.mrf.mxu0
      %v765 = vadd.f32 0.0, %v764
      %766 = vmatmul.f32.gmra.mxu0 %v727
      %v767 = vpop.f32.mrf.mxu0
      %v768 = vadd.f32 0.0, %v767
      %769 = vmatmul.f32.gmra.mxu0 %v730
      %v770 = vpop.f32.mrf.mxu0
      %v771 = vadd.f32 0.0, %v770
      %772 = vmatmul.f32.gmra.mxu0 %v733
      %v773 = vpop.f32.mrf.mxu0
      %v774 = vadd.f32 0.0, %v773
      %775 = vmatmul.f32.gmra.mxu0 %v736
      %v776 = vpop.f32.mrf.mxu0
      %v777 = vadd.f32 0.0, %v776
      %778 = vdwg.mxu0
      %v779 = vadd.f32 %v701, %v759
      %v780 = vadd.f32 %v702, %v762
      %v781 = vadd.f32 %v703, %v765
      %v782 = vadd.f32 %v704, %v768
      %v783 = vadd.f32 %v705, %v771
      %v784 = vadd.f32 %v706, %v774
      %v785 = vadd.f32 %v707, %v777
      %s786 = scalar_lea.vmem %s165, 16
      %v787 = vld [vmem:[%s786] sm:$0xff]
      %v788 = vld [vmem:[%s786 + $0x10] sm:$0xff]
      %v789 = vld [vmem:[%s786 + $0x20] sm:$0xff]
      %v790 = vld [vmem:[%s786 + $0x30] sm:$0xff]
      %v791 = vld [vmem:[%s786 + $0x40] sm:$0xff]
      %v792 = vld [vmem:[%s786 + $0x50] sm:$0xff]
      %v793 = vld [vmem:[%s786 + $0x60] sm:$0xff]
      %s794 = scalar_lea.vmem %s1, 32
      %v795 = vld [vmem:[%s794] sm:$0xf]
      %v797 = vsel %vm190, %v787, 0
      %v800 = vsel %vm190, %v788, 0
      %v803 = vsel %vm190, %v789, 0
      %v806 = vsel %vm190, %v790, 0
      %v809 = vsel %vm190, %v791, 0
      %v812 = vsel %vm190, %v792, 0
      %v815 = vsel %vm190, %v793, 0
      %v818 = vsel %vm212, %v795, 0
      %820 = vmatpush.msra.mxu0 0.0
      %821 = vmatpush.msra.mxu0 0.0
      %822 = vmatpush.msra.mxu0 0.0
      %823 = vmatpush.msra.mxu0 0.0
      %824 = vmatpush.msra.mxu0 0.0
      %825 = vmatpush.msra.mxu0 0.0
      %826 = vmatpush.msra.mxu0 0.0
      %827 = vmatpush.msra.mxu0 0.0
      %828 = vmatpush.msra.mxu0 0.0
      %829 = vmatpush.msra.mxu0 0.0
      %830 = vmatpush.msra.mxu0 0.0
      %831 = vmatpush.msra.mxu0 0.0
      %832 = vmatpush.msra.mxu0 0.0
      %833 = vmatpush.msra.mxu0 0.0
      %834 = vmatpush.msra.mxu0 0.0
      %835 = vmatpush.msra.mxu0 %v818
      %836 = vmatmul.f32.gmra.mxu0 %v797
      %v837 = vpop.f32.mrf.mxu0
      %v838 = vadd.f32 0.0, %v837
      %839 = vmatmul.f32.gmra.mxu0 %v800
      %v840 = vpop.f32.mrf.mxu0
      %v841 = vadd.f32 0.0, %v840
      %842 = vmatmul.f32.gmra.mxu0 %v803
      %v843 = vpop.f32.mrf.mxu0
      %v844 = vadd.f32 0.0, %v843
      %845 = vmatmul.f32.gmra.mxu0 %v806
      %v846 = vpop.f32.mrf.mxu0
      %v847 = vadd.f32 0.0, %v846
      %848 = vmatmul.f32.gmra.mxu0 %v809
      %v849 = vpop.f32.mrf.mxu0
      %v850 = vadd.f32 0.0, %v849
      %851 = vmatmul.f32.gmra.mxu0 %v812
      %v852 = vpop.f32.mrf.mxu0
      %v853 = vadd.f32 0.0, %v852
      %854 = vmatmul.f32.gmra.mxu0 %v815
      %v855 = vpop.f32.mrf.mxu0
      %v856 = vadd.f32 0.0, %v855
      %857 = vdwg.mxu0
      %v858 = vadd.f32 %v779, %v838
      %v859 = vadd.f32 %v780, %v841
      %v860 = vadd.f32 %v781, %v844
      %v861 = vadd.f32 %v782, %v847
      %v862 = vadd.f32 %v783, %v850
      %v863 = vadd.f32 %v784, %v853
      %v864 = vadd.f32 %v785, %v856
      %s865 = scalar_lea.vmem %s165, 144
      %v866 = vld [vmem:[%s865] sm:$0xff]
      %v867 = vld [vmem:[%s865 + $0x10] sm:$0xff]
      %v868 = vld [vmem:[%s865 + $0x20] sm:$0xff]
      %v869 = vld [vmem:[%s865 + $0x30] sm:$0xff]
      %v870 = vld [vmem:[%s865 + $0x40] sm:$0xff]
      %v871 = vld [vmem:[%s865 + $0x50] sm:$0xff]
      %v872 = vld [vmem:[%s865 + $0x60] sm:$0xff]
      %s873 = scalar_lea.vmem %s1, 36
      %v874 = vld [vmem:[%s873] sm:$0xf]
      %v876 = vsel %vm190, %v866, 0
      %v879 = vsel %vm190, %v867, 0
      %v882 = vsel %vm190, %v868, 0
      %v885 = vsel %vm190, %v869, 0
      %v888 = vsel %vm190, %v870, 0
      %v891 = vsel %vm190, %v871, 0
      %v894 = vsel %vm190, %v872, 0
      %v897 = vsel %vm212, %v874, 0
      %899 = vmatpush.msra.mxu0 0.0
      %900 = vmatpush.msra.mxu0 0.0
      %901 = vmatpush.msra.mxu0 0.0
      %902 = vmatpush.msra.mxu0 0.0
      %903 = vmatpush.msra.mxu0 0.0
      %904 = vmatpush.msra.mxu0 0.0
      %905 = vmatpush.msra.mxu0 0.0
      %906 = vmatpush.msra.mxu0 0.0
      %907 = vmatpush.msra.mxu0 0.0
      %908 = vmatpush.msra.mxu0 0.0
      %909 = vmatpush.msra.mxu0 0.0
      %910 = vmatpush.msra.mxu0 0.0
      %911 = vmatpush.msra.mxu0 0.0
      %912 = vmatpush.msra.mxu0 0.0
      %913 = vmatpush.msra.mxu0 0.0
      %914 = vmatpush.msra.mxu0 %v897
      %915 = vmatmul.f32.gmra.mxu0 %v876
      %v916 = vpop.f32.mrf.mxu0
      %v917 = vadd.f32 0.0, %v916
      %918 = vmatmul.f32.gmra.mxu0 %v879
      %v919 = vpop.f32.mrf.mxu0
      %v920 = vadd.f32 0.0, %v919
      %921 = vmatmul.f32.gmra.mxu0 %v882
      %v922 = vpop.f32.mrf.mxu0
      %v923 = vadd.f32 0.0, %v922
      %924 = vmatmul.f32.gmra.mxu0 %v885
      %v925 = vpop.f32.mrf.mxu0
      %v926 = vadd.f32 0.0, %v925
      %927 = vmatmul.f32.gmra.mxu0 %v888
      %v928 = vpop.f32.mrf.mxu0
      %v929 = vadd.f32 0.0, %v928
      %930 = vmatmul.f32.gmra.mxu0 %v891
      %v931 = vpop.f32.mrf.mxu0
      %v932 = vadd.f32 0.0, %v931
      %933 = vmatmul.f32.gmra.mxu0 %v894
      %v934 = vpop.f32.mrf.mxu0
      %v935 = vadd.f32 0.0, %v934
      %936 = vdwg.mxu0
      %v937 = vadd.f32 %v858, %v917
      %v938 = vadd.f32 %v859, %v920
      %v939 = vadd.f32 %v860, %v923
      %v940 = vadd.f32 %v861, %v926
      %v941 = vadd.f32 %v862, %v929
      %v942 = vadd.f32 %v863, %v932
      %v943 = vadd.f32 %v864, %v935
      %v944 = vld [vmem:[%s786 + $0x1] sm:$0xff]
      %v945 = vld [vmem:[%s786 + $0x11] sm:$0xff]
      %v946 = vld [vmem:[%s786 + $0x21] sm:$0xff]
      %v947 = vld [vmem:[%s786 + $0x31] sm:$0xff]
      %v948 = vld [vmem:[%s786 + $0x41] sm:$0xff]
      %v949 = vld [vmem:[%s786 + $0x51] sm:$0xff]
      %v950 = vld [vmem:[%s786 + $0x61] sm:$0xff]
      %s951 = scalar_lea.vmem %s1, 40
      %v952 = vld [vmem:[%s951] sm:$0xf]
      %v954 = vsel %vm190, %v944, 0
      %v957 = vsel %vm190, %v945, 0
      %v960 = vsel %vm190, %v946, 0
      %v963 = vsel %vm190, %v947, 0
      %v966 = vsel %vm190, %v948, 0
      %v969 = vsel %vm190, %v949, 0
      %v972 = vsel %vm190, %v950, 0
      %v975 = vsel %vm212, %v952, 0
      %977 = vmatpush.msra.mxu0 0.0
      %978 = vmatpush.msra.mxu0 0.0
      %979 = vmatpush.msra.mxu0 0.0
      %980 = vmatpush.msra.mxu0 0.0
      %981 = vmatpush.msra.mxu0 0.0
      %982 = vmatpush.msra.mxu0 0.0
      %983 = vmatpush.msra.mxu0 0.0
      %984 = vmatpush.msra.mxu0 0.0
      %985 = vmatpush.msra.mxu0 0.0
      %986 = vmatpush.msra.mxu0 0.0
      %987 = vmatpush.msra.mxu0 0.0
      %988 = vmatpush.msra.mxu0 0.0
      %989 = vmatpush.msra.mxu0 0.0
      %990 = vmatpush.msra.mxu0 0.0
      %991 = vmatpush.msra.mxu0 0.0
      %992 = vmatpush.msra.mxu0 %v975
      %993 = vmatmul.f32.gmra.mxu0 %v954
      %v994 = vpop.f32.mrf.mxu0
      %v995 = vadd.f32 0.0, %v994
      %996 = vmatmul.f32.gmra.mxu0 %v957
      %v997 = vpop.f32.mrf.mxu0
      %v998 = vadd.f32 0.0, %v997
      %999 = vmatmul.f32.gmra.mxu0 %v960
      %v1000 = vpop.f32.mrf.mxu0
      %v1001 = vadd.f32 0.0, %v1000
      %1002 = vmatmul.f32.gmra.mxu0 %v963
      %v1003 = vpop.f32.mrf.mxu0
      %v1004 = vadd.f32 0.0, %v1003
      %1005 = vmatmul.f32.gmra.mxu0 %v966
      %v1006 = vpop.f32.mrf.mxu0
      %v1007 = vadd.f32 0.0, %v1006
      %1008 = vmatmul.f32.gmra.mxu0 %v969
      %v1009 = vpop.f32.mrf.mxu0
      %v1010 = vadd.f32 0.0, %v1009
      %1011 = vmatmul.f32.gmra.mxu0 %v972
      %v1012 = vpop.f32.mrf.mxu0
      %v1013 = vadd.f32 0.0, %v1012
      %1014 = vdwg.mxu0
      %v1015 = vadd.f32 %v937, %v995
      %v1016 = vadd.f32 %v938, %v998
      %v1017 = vadd.f32 %v939, %v1001
      %v1018 = vadd.f32 %v940, %v1004
      %v1019 = vadd.f32 %v941, %v1007
      %v1020 = vadd.f32 %v942, %v1010
      %v1021 = vadd.f32 %v943, %v1013
      %v1022 = vld [vmem:[%s865 + $0x1] sm:$0xff]
      %v1023 = vld [vmem:[%s865 + $0x11] sm:$0xff]
      %v1024 = vld [vmem:[%s865 + $0x21] sm:$0xff]
      %v1025 = vld [vmem:[%s865 + $0x31] sm:$0xff]
      %v1026 = vld [vmem:[%s865 + $0x41] sm:$0xff]
      %v1027 = vld [vmem:[%s865 + $0x51] sm:$0xff]
      %v1028 = vld [vmem:[%s865 + $0x61] sm:$0xff]
      %s1029 = scalar_lea.vmem %s1, 44
      %v1030 = vld [vmem:[%s1029] sm:$0xf]
      %v1032 = vsel %vm190, %v1022, 0
      %v1035 = vsel %vm190, %v1023, 0
      %v1038 = vsel %vm190, %v1024, 0
      %v1041 = vsel %vm190, %v1025, 0
      %v1044 = vsel %vm190, %v1026, 0
      %v1047 = vsel %vm190, %v1027, 0
      %v1050 = vsel %vm190, %v1028, 0
      %v1053 = vsel %vm212, %v1030, 0
      %1055 = vmatpush.msra.mxu0 0.0
      %1056 = vmatpush.msra.mxu0 0.0
      %1057 = vmatpush.msra.mxu0 0.0
      %1058 = vmatpush.msra.mxu0 0.0
      %1059 = vmatpush.msra.mxu0 0.0
      %1060 = vmatpush.msra.mxu0 0.0
      %1061 = vmatpush.msra.mxu0 0.0
      %1062 = vmatpush.msra.mxu0 0.0
      %1063 = vmatpush.msra.mxu0 0.0
      %1064 = vmatpush.msra.mxu0 0.0
      %1065 = vmatpush.msra.mxu0 0.0
      %1066 = vmatpush.msra.mxu0 0.0
      %1067 = vmatpush.msra.mxu0 0.0
      %1068 = vmatpush.msra.mxu0 0.0
      %1069 = vmatpush.msra.mxu0 0.0
      %1070 = vmatpush.msra.mxu0 %v1053
      %1071 = vmatmul.f32.gmra.mxu0 %v1032
      %v1072 = vpop.f32.mrf.mxu0
      %v1073 = vadd.f32 0.0, %v1072
      %1074 = vmatmul.f32.gmra.mxu0 %v1035
      %v1075 = vpop.f32.mrf.mxu0
      %v1076 = vadd.f32 0.0, %v1075
      %1077 = vmatmul.f32.gmra.mxu0 %v1038
      %v1078 = vpop.f32.mrf.mxu0
      %v1079 = vadd.f32 0.0, %v1078
      %1080 = vmatmul.f32.gmra.mxu0 %v1041
      %v1081 = vpop.f32.mrf.mxu0
      %v1082 = vadd.f32 0.0, %v1081
      %1083 = vmatmul.f32.gmra.mxu0 %v1044
      %v1084 = vpop.f32.mrf.mxu0
      %v1085 = vadd.f32 0.0, %v1084
      %1086 = vmatmul.f32.gmra.mxu0 %v1047
      %v1087 = vpop.f32.mrf.mxu0
      %v1088 = vadd.f32 0.0, %v1087
      %1089 = vmatmul.f32.gmra.mxu0 %v1050
      %v1090 = vpop.f32.mrf.mxu0
      %v1091 = vadd.f32 0.0, %v1090
      %1092 = vdwg.mxu0
      %v1093 = vadd.f32 %v1015, %v1073
      %v1094 = vadd.f32 %v1016, %v1076
      %v1095 = vadd.f32 %v1017, %v1079
      %v1096 = vadd.f32 %v1018, %v1082
      %v1097 = vadd.f32 %v1019, %v1085
      %v1098 = vadd.f32 %v1020, %v1088
      %v1099 = vadd.f32 %v1021, %v1091
      %s1100 = scalar_lea.vmem %s165, 272
      %v1101 = vld [vmem:[%s1100] sm:$0xff]
      %v1102 = vld [vmem:[%s1100 + $0x10] sm:$0xff]
      %v1103 = vld [vmem:[%s1100 + $0x20] sm:$0xff]
      %v1104 = vld [vmem:[%s1100 + $0x30] sm:$0xff]
      %v1105 = vld [vmem:[%s1100 + $0x40] sm:$0xff]
      %v1106 = vld [vmem:[%s1100 + $0x50] sm:$0xff]
      %v1107 = vld [vmem:[%s1100 + $0x60] sm:$0xff]
      %s1108 = scalar_lea.vmem %s1, 48
      %v1109 = vld [vmem:[%s1108] sm:$0xf]
      %v1111 = vsel %vm190, %v1101, 0
      %v1114 = vsel %vm190, %v1102, 0
      %v1117 = vsel %vm190, %v1103, 0
      %v1120 = vsel %vm190, %v1104, 0
      %v1123 = vsel %vm190, %v1105, 0
      %v1126 = vsel %vm190, %v1106, 0
      %v1129 = vsel %vm190, %v1107, 0
      %v1132 = vsel %vm212, %v1109, 0
      %1134 = vmatpush.msra.mxu0 0.0
      %1135 = vmatpush.msra.mxu0 0.0
      %1136 = vmatpush.msra.mxu0 0.0
      %1137 = vmatpush.msra.mxu0 0.0
      %1138 = vmatpush.msra.mxu0 0.0
      %1139 = vmatpush.msra.mxu0 0.0
      %1140 = vmatpush.msra.mxu0 0.0
      %1141 = vmatpush.msra.mxu0 0.0
      %1142 = vmatpush.msra.mxu0 0.0
      %1143 = vmatpush.msra.mxu0 0.0
      %1144 = vmatpush.msra.mxu0 0.0
      %1145 = vmatpush.msra.mxu0 0.0
      %1146 = vmatpush.msra.mxu0 0.0
      %1147 = vmatpush.msra.mxu0 0.0
      %1148 = vmatpush.msra.mxu0 0.0
      %1149 = vmatpush.msra.mxu0 %v1132
      %1150 = vmatmul.f32.gmra.mxu0 %v1111
      %v1151 = vpop.f32.mrf.mxu0
      %v1152 = vadd.f32 0.0, %v1151
      %1153 = vmatmul.f32.gmra.mxu0 %v1114
      %v1154 = vpop.f32.mrf.mxu0
      %v1155 = vadd.f32 0.0, %v1154
      %1156 = vmatmul.f32.gmra.mxu0 %v1117
      %v1157 = vpop.f32.mrf.mxu0
      %v1158 = vadd.f32 0.0, %v1157
      %1159 = vmatmul.f32.gmra.mxu0 %v1120
      %v1160 = vpop.f32.mrf.mxu0
      %v1161 = vadd.f32 0.0, %v1160
      %1162 = vmatmul.f32.gmra.mxu0 %v1123
      %v1163 = vpop.f32.mrf.mxu0
      %v1164 = vadd.f32 0.0, %v1163
      %1165 = vmatmul.f32.gmra.mxu0 %v1126
      %v1166 = vpop.f32.mrf.mxu0
      %v1167 = vadd.f32 0.0, %v1166
      %1168 = vmatmul.f32.gmra.mxu0 %v1129
      %v1169 = vpop.f32.mrf.mxu0
      %v1170 = vadd.f32 0.0, %v1169
      %1171 = vdwg.mxu0
      %v1172 = vadd.f32 %v1093, %v1152
      %v1173 = vadd.f32 %v1094, %v1155
      %v1174 = vadd.f32 %v1095, %v1158
      %v1175 = vadd.f32 %v1096, %v1161
      %v1176 = vadd.f32 %v1097, %v1164
      %v1177 = vadd.f32 %v1098, %v1167
      %v1178 = vadd.f32 %v1099, %v1170
      %s1179 = scalar_lea.vmem %s165, 400
      %v1180 = vld [vmem:[%s1179] sm:$0xff]
      %v1181 = vld [vmem:[%s1179 + $0x10] sm:$0xff]
      %v1182 = vld [vmem:[%s1179 + $0x20] sm:$0xff]
      %v1183 = vld [vmem:[%s1179 + $0x30] sm:$0xff]
      %v1184 = vld [vmem:[%s1179 + $0x40] sm:$0xff]
      %v1185 = vld [vmem:[%s1179 + $0x50] sm:$0xff]
      %v1186 = vld [vmem:[%s1179 + $0x60] sm:$0xff]
      %s1187 = scalar_lea.vmem %s1, 52
      %v1188 = vld [vmem:[%s1187] sm:$0xf]
      %v1190 = vsel %vm190, %v1180, 0
      %v1193 = vsel %vm190, %v1181, 0
      %v1196 = vsel %vm190, %v1182, 0
      %v1199 = vsel %vm190, %v1183, 0
      %v1202 = vsel %vm190, %v1184, 0
      %v1205 = vsel %vm190, %v1185, 0
      %v1208 = vsel %vm190, %v1186, 0
      %v1211 = vsel %vm212, %v1188, 0
      %1213 = vmatpush.msra.mxu0 0.0
      %1214 = vmatpush.msra.mxu0 0.0
      %1215 = vmatpush.msra.mxu0 0.0
      %1216 = vmatpush.msra.mxu0 0.0
      %1217 = vmatpush.msra.mxu0 0.0
      %1218 = vmatpush.msra.mxu0 0.0
      %1219 = vmatpush.msra.mxu0 0.0
      %1220 = vmatpush.msra.mxu0 0.0
      %1221 = vmatpush.msra.mxu0 0.0
      %1222 = vmatpush.msra.mxu0 0.0
      %1223 = vmatpush.msra.mxu0 0.0
      %1224 = vmatpush.msra.mxu0 0.0
      %1225 = vmatpush.msra.mxu0 0.0
      %1226 = vmatpush.msra.mxu0 0.0
      %1227 = vmatpush.msra.mxu0 0.0
      %1228 = vmatpush.msra.mxu0 %v1211
      %1229 = vmatmul.f32.gmra.mxu0 %v1190
      %v1230 = vpop.f32.mrf.mxu0
      %v1231 = vadd.f32 0.0, %v1230
      %1232 = vmatmul.f32.gmra.mxu0 %v1193
      %v1233 = vpop.f32.mrf.mxu0
      %v1234 = vadd.f32 0.0, %v1233
      %1235 = vmatmul.f32.gmra.mxu0 %v1196
      %v1236 = vpop.f32.mrf.mxu0
      %v1237 = vadd.f32 0.0, %v1236
      %1238 = vmatmul.f32.gmra.mxu0 %v1199
      %v1239 = vpop.f32.mrf.mxu0
      %v1240 = vadd.f32 0.0, %v1239
      %1241 = vmatmul.f32.gmra.mxu0 %v1202
      %v1242 = vpop.f32.mrf.mxu0
      %v1243 = vadd.f32 0.0, %v1242
      %1244 = vmatmul.f32.gmra.mxu0 %v1205
      %v1245 = vpop.f32.mrf.mxu0
      %v1246 = vadd.f32 0.0, %v1245
      %1247 = vmatmul.f32.gmra.mxu0 %v1208
      %v1248 = vpop.f32.mrf.mxu0
      %v1249 = vadd.f32 0.0, %v1248
      %1250 = vdwg.mxu0
      %v1251 = vadd.f32 %v1172, %v1231
      %v1252 = vadd.f32 %v1173, %v1234
      %v1253 = vadd.f32 %v1174, %v1237
      %v1254 = vadd.f32 %v1175, %v1240
      %v1255 = vadd.f32 %v1176, %v1243
      %v1256 = vadd.f32 %v1177, %v1246
      %v1257 = vadd.f32 %v1178, %v1249
      %v1258 = vld [vmem:[%s1100 + $0x1] sm:$0xff]
      %v1259 = vld [vmem:[%s1100 + $0x11] sm:$0xff]
      %v1260 = vld [vmem:[%s1100 + $0x21] sm:$0xff]
      %v1261 = vld [vmem:[%s1100 + $0x31] sm:$0xff]
      %v1262 = vld [vmem:[%s1100 + $0x41] sm:$0xff]
      %v1263 = vld [vmem:[%s1100 + $0x51] sm:$0xff]
      %v1264 = vld [vmem:[%s1100 + $0x61] sm:$0xff]
      %s1265 = scalar_lea.vmem %s1, 56
      %v1266 = vld [vmem:[%s1265] sm:$0xf]
      %v1268 = vsel %vm190, %v1258, 0
      %v1271 = vsel %vm190, %v1259, 0
      %v1274 = vsel %vm190, %v1260, 0
      %v1277 = vsel %vm190, %v1261, 0
      %v1280 = vsel %vm190, %v1262, 0
      %v1283 = vsel %vm190, %v1263, 0
      %v1286 = vsel %vm190, %v1264, 0
      %v1289 = vsel %vm212, %v1266, 0
      %1291 = vmatpush.msra.mxu0 0.0
      %1292 = vmatpush.msra.mxu0 0.0
      %1293 = vmatpush.msra.mxu0 0.0
      %1294 = vmatpush.msra.mxu0 0.0
      %1295 = vmatpush.msra.mxu0 0.0
      %1296 = vmatpush.msra.mxu0 0.0
      %1297 = vmatpush.msra.mxu0 0.0
      %1298 = vmatpush.msra.mxu0 0.0
      %1299 = vmatpush.msra.mxu0 0.0
      %1300 = vmatpush.msra.mxu0 0.0
      %1301 = vmatpush.msra.mxu0 0.0
      %1302 = vmatpush.msra.mxu0 0.0
      %1303 = vmatpush.msra.mxu0 0.0
      %1304 = vmatpush.msra.mxu0 0.0
      %1305 = vmatpush.msra.mxu0 0.0
      %1306 = vmatpush.msra.mxu0 %v1289
      %1307 = vmatmul.f32.gmra.mxu0 %v1268
      %v1308 = vpop.f32.mrf.mxu0
      %v1309 = vadd.f32 0.0, %v1308
      %1310 = vmatmul.f32.gmra.mxu0 %v1271
      %v1311 = vpop.f32.mrf.mxu0
      %v1312 = vadd.f32 0.0, %v1311
      %1313 = vmatmul.f32.gmra.mxu0 %v1274
      %v1314 = vpop.f32.mrf.mxu0
      %v1315 = vadd.f32 0.0, %v1314
      %1316 = vmatmul.f32.gmra.mxu0 %v1277
      %v1317 = vpop.f32.mrf.mxu0
      %v1318 = vadd.f32 0.0, %v1317
      %1319 = vmatmul.f32.gmra.mxu0 %v1280
      %v1320 = vpop.f32.mrf.mxu0
      %v1321 = vadd.f32 0.0, %v1320
      %1322 = vmatmul.f32.gmra.mxu0 %v1283
      %v1323 = vpop.f32.mrf.mxu0
      %v1324 = vadd.f32 0.0, %v1323
      %1325 = vmatmul.f32.gmra.mxu0 %v1286
      %v1326 = vpop.f32.mrf.mxu0
      %v1327 = vadd.f32 0.0, %v1326
      %1328 = vdwg.mxu0
      %v1329 = vadd.f32 %v1251, %v1309
      %v1330 = vadd.f32 %v1252, %v1312
      %v1331 = vadd.f32 %v1253, %v1315
      %v1332 = vadd.f32 %v1254, %v1318
      %v1333 = vadd.f32 %v1255, %v1321
      %v1334 = vadd.f32 %v1256, %v1324
      %v1335 = vadd.f32 %v1257, %v1327
      %v1336 = vld [vmem:[%s1179 + $0x1] sm:$0xff]
      %v1337 = vld [vmem:[%s1179 + $0x11] sm:$0xff]
      %v1338 = vld [vmem:[%s1179 + $0x21] sm:$0xff]
      %v1339 = vld [vmem:[%s1179 + $0x31] sm:$0xff]
      %v1340 = vld [vmem:[%s1179 + $0x41] sm:$0xff]
      %v1341 = vld [vmem:[%s1179 + $0x51] sm:$0xff]
      %v1342 = vld [vmem:[%s1179 + $0x61] sm:$0xff]
      %s1343 = scalar_lea.vmem %s1, 60
      %v1344 = vld [vmem:[%s1343] sm:$0xf]
      %v1346 = vsel %vm190, %v1336, 0
      %v1349 = vsel %vm190, %v1337, 0
      %v1352 = vsel %vm190, %v1338, 0
      %v1355 = vsel %vm190, %v1339, 0
      %v1358 = vsel %vm190, %v1340, 0
      %v1361 = vsel %vm190, %v1341, 0
      %v1364 = vsel %vm190, %v1342, 0
      %v1367 = vsel %vm212, %v1344, 0
      %1369 = vmatpush.msra.mxu0 0.0
      %1370 = vmatpush.msra.mxu0 0.0
      %1371 = vmatpush.msra.mxu0 0.0
      %1372 = vmatpush.msra.mxu0 0.0
      %1373 = vmatpush.msra.mxu0 0.0
      %1374 = vmatpush.msra.mxu0 0.0
      %1375 = vmatpush.msra.mxu0 0.0
      %1376 = vmatpush.msra.mxu0 0.0
      %1377 = vmatpush.msra.mxu0 0.0
      %1378 = vmatpush.msra.mxu0 0.0
      %1379 = vmatpush.msra.mxu0 0.0
      %1380 = vmatpush.msra.mxu0 0.0
      %1381 = vmatpush.msra.mxu0 0.0
      %1382 = vmatpush.msra.mxu0 0.0
      %1383 = vmatpush.msra.mxu0 0.0
      %1384 = vmatpush.msra.mxu0 %v1367
      %1385 = vmatmul.f32.gmra.mxu0 %v1346
      %v1386 = vpop.f32.mrf.mxu0
      %v1387 = vadd.f32 0.0, %v1386
      %1388 = vmatmul.f32.gmra.mxu0 %v1349
      %v1389 = vpop.f32.mrf.mxu0
      %v1390 = vadd.f32 0.0, %v1389
      %1391 = vmatmul.f32.gmra.mxu0 %v1352
      %v1392 = vpop.f32.mrf.mxu0
      %v1393 = vadd.f32 0.0, %v1392
      %1394 = vmatmul.f32.gmra.mxu0 %v1355
      %v1395 = vpop.f32.mrf.mxu0
      %v1396 = vadd.f32 0.0, %v1395
      %1397 = vmatmul.f32.gmra.mxu0 %v1358
      %v1398 = vpop.f32.mrf.mxu0
      %v1399 = vadd.f32 0.0, %v1398
      %1400 = vmatmul.f32.gmra.mxu0 %v1361
      %v1401 = vpop.f32.mrf.mxu0
      %v1402 = vadd.f32 0.0, %v1401
      %1403 = vmatmul.f32.gmra.mxu0 %v1364
      %v1404 = vpop.f32.mrf.mxu0
      %v1405 = vadd.f32 0.0, %v1404
      %1406 = vdwg.mxu0
      %v1407 = vadd.f32 %v1329, %v1387
      %v1408 = vadd.f32 %v1330, %v1390
      %v1409 = vadd.f32 %v1331, %v1393
      %v1410 = vadd.f32 %v1332, %v1396
      %v1411 = vadd.f32 %v1333, %v1399
      %v1412 = vadd.f32 %v1334, %v1402
      %v1413 = vadd.f32 %v1335, %v1405
      %v1414 = vld [vmem:[%s2] sm:$0x1]
      %v1416 = vperm.slane %v1414, 0
      %v1418 = vadd.f32 %v1407, %v1416
      %v1419 = vadd.f32 %v1408, %v1416
      %v1420 = vadd.f32 %v1409, %v1416
      %v1421 = vadd.f32 %v1410, %v1416
      %v1422 = vadd.f32 %v1411, %v1416
      %v1423 = vadd.f32 %v1412, %v1416
      %v1424 = vadd.f32 %v1413, %v1416
      %v1425 = vmax.f32 %v1418, 0.0
      %v1426 = vmax.f32 %v1419, 0.0
      %v1427 = vmax.f32 %v1420, 0.0
      %v1428 = vmax.f32 %v1421, 0.0
      %v1429 = vmax.f32 %v1422, 0.0
      %v1430 = vmax.f32 %v1423, 0.0
      %v1431 = vmax.f32 %v1424, 0.0
      %vm1432 = vcmask 261120
      %1433 = vst.msk [vmem:[%s170] sm:$0xff] %vm1432, %v1425
      %1434 = vst.msk [vmem:[%s170 + $0x8] sm:$0xff] %vm1432, %v1426
      %1435 = vst.msk [vmem:[%s170 + $0x10] sm:$0xff] %vm1432, %v1427
      %1436 = vst.msk [vmem:[%s170 + $0x18] sm:$0xff] %vm1432, %v1428
      %1437 = vst.msk [vmem:[%s170 + $0x20] sm:$0xff] %vm1432, %v1429
      %1438 = vst.msk [vmem:[%s170 + $0x28] sm:$0xff] %vm1432, %v1430
      %1439 = vst.msk [vmem:[%s170 + $0x30] sm:$0xff] %vm1432, %v1431
      %s1440 = smul.u32 7, %s14
      %p1441 = scmp.lt.s32.totalorder %s1440, 13
      %s1442 = scalar_select %p1441, %s1440, 13
      %s1443 = smul.addr %s1442, 8
      %s1444 = scalar_lea.vmem %s3, %s1443
      // Predicated region
      $region33: #{cnn_forward.2} parent=31 // pred_check
        %p1445 = pneg %p100
      $region34: #{cnn_forward.2} parent=31 // pred_check_branch
        %1447 = sbr.rel (%p1445) target = $region36
      $region35: #{cnn_forward.2} parent=31 // pred_region
        %s1448 = smul.u32 7, %s14
      $region36: #{cnn_forward.2} parent=31 // pred_fallthru
        _
    $region32: #{cnn_forward.2} parent=5 // pred_fallthru
      _
    %p1449 = scmp.le.s32.totalorder 2, %s9
    // Predicated region
    $region37: #{cnn_forward.2} parent=5 // pred_check
      %p1450 = pneg %p1449
    $region38: #{cnn_forward.2} parent=5 // pred_check_branch
      %1452 = sbr.rel (%p1450) target = $region40
    $region39: #{cnn_forward.2} parent=5 // pred_region
      %s1453 = ssub.s32 %s9, 2
      // Predicated region
      $region41: #{cnn_forward.2} parent=39 // pred_check
        %p1454 = pneg %p106
      $region42: #{cnn_forward.2} parent=39 // pred_check_branch
        %1456 = sbr.rel (%p1454) target = $region44
      $region43: #{cnn_forward.2} parent=39 // pred_region
        %s1457 = smul.u32 7, %s15
        %p1458 = scmp.lt.s32.totalorder %s1457, 13
        %s1459 = scalar_select %p1458, %s1457, 13
        %s1460 = smul.addr %s1459, 8
        %s1461 = scalar_lea.vmem %s3, %s1460
      $region44: #{cnn_forward.2} parent=39 // pred_fallthru
        _
    $region40: #{cnn_forward.2} parent=5 // pred_fallthru
      _
  $region6: #{cnn_forward.2} parent=0 // loop_footer
    %s13 = sadd.s32 1, %s9
  $region7: #{cnn_forward.2} parent=0 // loop_footer_branch
    %8 = sbr.rel target = $region3
  $region8: #{cnn_forward.2} parent=0 // loop_exit
    _

</llo_original>
